<compile_context>
chip_gen: v7x
topology: tpu7x:2x2x1
jax: 0.10.0
libtpu: 0.0.40
codegen_flags: <defaults>
</compile_context>

<pallas_src>
import functools

import jax
import jax.numpy as jnp
from jax import lax
from jax.experimental import pallas as pl
from jax.experimental.pallas import tpu as pltpu


def _round_up(x, m):
    return ((x + m - 1) // m) * m


def _default_vmem_limit():
    """Generation-aware scoped-VMEM limit (~75% of physical), v7x-safe fallback."""
    try:
        cap = pltpu.get_tpu_info().vmem_capacity_bytes
    except Exception:   # no TPU / older jax: assume smallest generation (v7x, 64 MiB)
        cap = 64 * 1024 * 1024
    return int(cap) * 3 // 4


_VMEM_LIMIT_BYTES = _default_vmem_limit()
_VMEM_TILE_BUDGET = _VMEM_LIMIT_BYTES - (4 << 20)   # headroom for compiler scratch
_KC_MAX = 2048                                       # codebook chunk width (lanes)


def _pick_tile_rows(n_rows, d, k, kc, x_itemsize, budget=_VMEM_TILE_BUDGET):
    """Largest row tile whose working set (double-buffered I/O blocks plus the
    live (TM, KC) in-kernel intermediates) fits the VMEM budget.  Keeps at
    least two tiles (when N allows) so the 'parallel' grid axis can be split
    across both TensorCores on v7x."""
    # resident, double-buffered by the pipeline: bf16 codebook, f32 0.5*||e||^2,
    # per-tile counts block, plus slack
    fixed = 2 * (k * d * 2) + 2 * (k * 4) + 2 * (k * 4) + (2 << 20)
    # per tile row: double-buffered x/q/idx/mind blocks, live f32/bf16 row
    # copies (x, quant, diff, ...), and ~5 live (TM, KC) chunk intermediates
    # (score f32, iota i32, one_hot f32 + bf16, compare mask)
    per_row = (2 * d * x_itemsize + 2 * d * 2 + 2 * (4 + 4)
               + 4 * d * 4 + 2 * d * 2 + 20 * kc)
    tm = 1024
    while tm > 64 and fixed + tm * per_row > budget:
        tm //= 2
    if n_rows > 16:
        # >= 2 tiles, 8-row aligned (v7x megacore split; harmless on v5e/v6e)
        tm = min(tm, _round_up(pl.cdiv(n_rows, 2), 8))
    else:
        tm = min(tm, n_rows)
    return max(tm, 1)


def _vq_kernel(x_ref, e_ref, hesq_ref, q_ref, idx_ref, mind_ref, counts_ref, *,
               n_rows, kc, n_kchunks, mask_tail):
    """One independent row-tile of the VQ forward.

    x_ref:      (TM, D)      input rows (ragged tail rows hold undefined data)
    e_ref:      (K,  D)      codebook (bf16, resident across the grid)
    hesq_ref:   (1,  K)      0.5 * ||e_k||^2 precomputed in f32
    q_ref:      (TM, D)      quantized rows (0 for invalid rows), bf16
    idx_ref:    (1, 1, TM)   chosen codebook index per row (0 for invalid rows)
    mind_ref:   (1, 1, TM)   ||x - quantized||^2 per row (0 for invalid rows)
    counts_ref: (1, 1, K)    per-tile codebook usage counts over valid rows
    """
    i = pl.program_id(0)
    tm, d = x_ref.shape
    k = e_ref.shape[0]

    x = x_ref[...].astype(jnp.float32)                                  # (TM, D)
    if mask_tail:
        # ragged last tile: rows >= n_rows hold undefined data -> zero them so
        # they behave exactly like invalid (padding) rows downstream
        row = i * tm + lax.broadcasted_iota(jnp.int32, (tm, 1), 0)
        x = jnp.where(row < n_rows, x, 0.0)
    x_bf = x.astype(jnp.bfloat16)

    # validity (matches torch.norm(x) > 1e-6, without the sqrt)
    x_sq = jnp.sum(x * x, axis=-1, keepdims=True)                       # (TM, 1)
    validf = (x_sq > 1e-12).astype(jnp.float32)

    # ---- pass 1: online argmin over codebook chunks -------------------------
    # score_k = 0.5*||e_k||^2 - x.e_k  (||x||^2 and the factor 2 are per-row
    # constants, so they are dropped / folded out of the argmin score)
    run_min = None
    run_idx = None
    for c in range(n_kchunks):
        c0 = c * kc
        csz = min(kc, k - c0)
        e_c = e_ref[pl.ds(c0, csz), :]                                   # (csz, D) bf16
        score = hesq_ref[:, pl.ds(c0, csz)] - lax.dot_general(
            x_bf, e_c, (((1,), (1,)), ((), ())),
            preferred_element_type=jnp.float32)                         # (TM, csz)
        cmin = jnp.min(score, axis=-1, keepdims=True)                   # (TM, 1)
        kio = c0 + lax.broadcasted_iota(jnp.int32, (tm, csz), 1)
        cidx = jnp.min(jnp.where(score <= cmin, kio, k),
                       axis=-1, keepdims=True)                          # (TM, 1)
        if c == 0:
            run_min, run_idx = cmin, cidx
        else:
            better = cmin < run_min     # strict '<' keeps first-occurrence ties
            run_min = jnp.where(better, cmin, run_min)
            run_idx = jnp.where(better, cidx, run_idx)

    # ---- pass 2: gather / per-row stats, lane-dense via the MXU -------------
    ones_row = jnp.ones((1, tm), jnp.bfloat16)
    quant = None
    idx_row = None
    counts_chunks = []
    for c in range(n_kchunks):
        c0 = c * kc
        csz = min(kc, k - c0)
        e_c = e_ref[pl.ds(c0, csz), :]                                   # (csz, D)
        kio = c0 + lax.broadcasted_iota(jnp.int32, (tm, csz), 1)
        one_hot = (kio == run_idx).astype(jnp.float32) * validf         # (TM, csz)
        one_hot_bf = one_hot.astype(jnp.bfloat16)
        # codebook gather on the MXU; invalid rows come out as exactly 0
        qc = lax.dot_general(one_hot_bf, e_c, (((1,), (0,)), ((), ())),
                             preferred_element_type=jnp.float32)        # (TM, D)
        # chosen index as a lane-dense (1, TM) row (HIGHEST keeps large
        # integer indices exact)
        kf = (c0 + lax.broadcasted_iota(jnp.int32, (1, csz), 1)).astype(jnp.float32)
        ic = lax.dot_general(kf, one_hot, (((1,), (1,)), ((), ())),
                             precision=lax.Precision.HIGHEST,
                             preferred_element_type=jnp.float32)        # (1, TM)
        # per-code usage counts on the MXU (exact: 0/1 operands, f32 accumulate)
        counts_chunks.append(
            lax.dot_general(ones_row, one_hot_bf, (((1,), (0,)), ((), ())),
                            preferred_element_type=jnp.float32))        # (1, csz)
        quant = qc if quant is None else quant + qc
        idx_row = ic if idx_row is None else idx_row + ic

    q_ref[...] = quant.astype(q_ref.dtype)

    # ||x - quantized||^2 per row, lane-dense: ones(1,D) . (diff^2)^T on the MXU
    diff = (quant - x) * validf                                          # (TM, D)
    mind_row = lax.dot_general(jnp.ones((1, d), jnp.float32), diff * diff,
                               (((1,), (1,)), ((), ())),
                               preferred_element_type=jnp.float32)       # (1, TM)

    idx_ref[...] = (idx_row + 0.5).astype(jnp.int32).reshape(1, 1, tm)
    mind_ref[...] = mind_row.reshape(1, 1, tm)
    counts = (counts_chunks[0] if n_kchunks == 1
              else jnp.concatenate(counts_chunks, axis=1))
    counts_ref[...] = counts.reshape(1, 1, k)


@functools.partial(jax.jit, static_argnames=("perplexity_weight", "block_rows"))
def vector_quantizer_forward(inputs, embedding, perplexity_weight=0.01,
                             block_rows=None):
    """Eval-mode forward of VectorQuantizer.

    inputs:    (..., D)  channels-last activations
    embedding: (K, D)    codebook
    """
    K, D = embedding.shape
    orig_shape = inputs.shape
    flat = inputs.reshape(-1, D)
    N = flat.shape[0]

    KC = K if K <= _KC_MAX else _KC_MAX
    n_kchunks = pl.cdiv(K, KC)

    TM = block_rows if block_rows is not None else _pick_tile_rows(
        N, D, K, KC, flat.dtype.itemsize)
    n_tiles = pl.cdiv(N, TM)
    mask_tail = (N % TM) != 0

    e_f32 = embedding.astype(jnp.float32)
    e_bf = embedding.astype(jnp.bfloat16)                 # bf16 MXU operand / half DMA
    half_esq = 0.5 * jnp.sum(e_f32 * e_f32, axis=-1).reshape(1, K)   # hoisted

    out_shapes = (
        jax.ShapeDtypeStruct((N, D), jnp.bfloat16),             # quantized rows
        jax.ShapeDtypeStruct((n_tiles, 1, TM), jnp.int32),      # indices (lane-dense)
        jax.ShapeDtypeStruct((n_tiles, 1, TM), jnp.float32),    # min distances
        jax.ShapeDtypeStruct((n_tiles, 1, K), jnp.float32),     # per-tile usage counts
    )
    in_specs = [
        pl.BlockSpec((TM, D), lambda i: (i, 0)),
        pl.BlockSpec((K, D), lambda i: (0, 0)),       # codebook, resident
        pl.BlockSpec((1, K), lambda i: (0, 0)),       # 0.5*||e||^2, resident
    ]
    out_specs = [
        pl.BlockSpec((TM, D), lambda i: (i, 0)),
        pl.BlockSpec((1, 1, TM), lambda i: (i, 0, 0)),
        pl.BlockSpec((1, 1, TM), lambda i: (i, 0, 0)),
        pl.BlockSpec((1, 1, K), lambda i: (i, 0, 0)),
    ]

    q_p, idx_p, mind_p, counts_p = pl.pallas_call(
        functools.partial(_vq_kernel, n_rows=N, kc=KC, n_kchunks=n_kchunks,
                          mask_tail=mask_tail),
        out_shape=out_shapes,
        grid=(n_tiles,),
        in_specs=in_specs,
        out_specs=out_specs,
        compiler_params=pltpu.CompilerParams(
            dimension_semantics=("parallel",),         # tiles are fully independent
            vmem_limit_bytes=_VMEM_LIMIT_BYTES),
    )(flat, e_bf, half_esq)

    indices_flat = idx_p.reshape(-1)[:N]                        # (N,)
    min_distances_flat = mind_p.reshape(-1)[:N]                 # (N,)

    counts = jnp.sum(counts_p, axis=(0, 1))                     # (K,) usage counts
    n_valid = jnp.maximum(jnp.sum(counts), 1.0)
    sse = jnp.sum(mind_p)            # invalid / out-of-range rows contribute 0

    # losses (loss_commit has the same value as loss_vq; only grads differ in torch)
    loss_vq = sse / (n_valid * D)
    loss_commit = loss_vq
    loss = loss_commit * 0.0 + loss_vq

    avg_probs = counts / n_valid
    perplexity = jnp.exp(-jnp.sum(avg_probs * jnp.log(avg_probs + 1e-10)))
    perplexity_loss = -jnp.log(perplexity + 1e-10)
    total_loss = loss + perplexity_weight * perplexity_loss

    quantized = q_p.astype(inputs.dtype).reshape(orig_shape)
    indices = indices_flat.reshape(orig_shape[:-1])
    min_distances = min_distances_flat.reshape(orig_shape[:-1])

    # NOTE: the straight-through value `inputs + sg(quantized - inputs)` equals
    # `quantized` in the forward pass, so we skip the extra (N, D) add/sub HBM
    # round trip.  TODO(synk): STE gradients through the Pallas kernel are not
    # defined (forward-only implementation).
    quantized_st = quantized

    return {
        "quantized": quantized_st,
        "loss": total_loss,
        "encoding_indices": indices_flat,
        "indices": indices,
        "min_distances": min_distances,
        "loss_commit": loss_commit,
        "perplexity_loss": perplexity_loss,
        "loss_theta": 0,
        "perplexity": perplexity,
        "usage_count_update": counts,
    }


if __name__ == "__main__":
    # small, deterministic setup
    num_embeddings = 64
    embedding_dim = 32
    B, H, W = 2, 4, 5                     # N = 40 flattened rows

    key = jax.random.PRNGKey(0)
    k_x, k_e = jax.random.split(key)

    # nn.Embedding default init: N(0, 1)
    embedding = jax.random.normal(k_e, (num_embeddings, embedding_dim),
                                  dtype=jnp.float32)

    # layout: (B, H, W, D) channels-last
    x = jax.random.normal(k_x, (B, H, W, embedding_dim), dtype=jnp.float32)
    # exercise the "padding token" (invalid) path with an all-zero vector
    x = x.at[0, 0, 0, :].set(0.0)

    out = vector_quantizer_forward(x, embedding, perplexity_weight=0.01)
    jax.block_until_ready(out)

    assert out["quantized"].shape == x.shape
    assert out["indices"].shape == (B, H, W)
    assert out["min_distances"].shape == (B, H, W)
    assert out["encoding_indices"].shape == (B * H * W,)
    # the zero row must map to quantized == 0 / index 0 / distance 0
    assert float(jnp.abs(out["quantized"][0, 0, 0]).sum()) == 0.0
    assert int(out["indices"][0, 0, 0]) == 0
    assert float(out["min_distances"][0, 0, 0]) == 0.0
    assert bool(jnp.isfinite(out["loss"]))

    # plain-JAX reference check (tolerances account for bf16 MXU operands)
    flat = x.reshape(-1, embedding_dim)
    valid = jnp.sqrt(jnp.sum(flat * flat, axis=-1)) > 1e-6
    d_ref = (jnp.sum(flat ** 2, -1, keepdims=True)
             + jnp.sum(embedding ** 2, -1) - 2.0 * flat @ embedding.T)
    ref_min = jnp.min(d_ref, axis=-1)
    got_min = out["min_distances"].reshape(-1)
    ok_dist = jnp.where(valid,
                        jnp.abs(got_min - ref_min) <= 0.1 + 0.05 * jnp.abs(ref_min),
                        got_min == 0.0)
    assert bool(jnp.all(ok_dist))
    e_bf_rows = embedding.astype(jnp.bfloat16).astype(jnp.float32)
    expect_q = jnp.where(valid[:, None], e_bf_rows[out["encoding_indices"]], 0.0)
    assert bool(jnp.allclose(out["quantized"].reshape(-1, embedding_dim),
                             expect_q, atol=1e-3))

    # multi-tile + ragged-tail path: force 16-row tiles (grid=3, last tile ragged)
    out2 = vector_quantizer_forward(x, embedding, perplexity_weight=0.01,
                                    block_rows=16)
    jax.block_until_ready(out2)
    assert bool(jnp.array_equal(out["encoding_indices"], out2["encoding_indices"]))
    assert bool(jnp.allclose(out["quantized"], out2["quantized"], atol=1e-5))
    assert bool(jnp.allclose(out["min_distances"], out2["min_distances"], atol=1e-5))
    assert bool(jnp.allclose(out["loss"], out2["loss"], atol=1e-5))

    print("KERNEL_OK")
</pallas_src>

<mosaic_0001>
module attributes {stable_mosaic.version = 11 : i64} {
  func.func @_vq_kernel(%arg0: i32, %arg1: memref<24x32xf32, #tpu.memory_space<vmem>>, %arg2: memref<64x32xbf16, #tpu.memory_space<vmem>>, %arg3: memref<1x64xf32, #tpu.memory_space<vmem>>, %arg4: memref<24x32xbf16, #tpu.memory_space<vmem>>, %arg5: memref<1x1x24xi32, #tpu.memory_space<vmem>>, %arg6: memref<1x1x24xf32, #tpu.memory_space<vmem>>, %arg7: memref<1x1x64xf32, #tpu.memory_space<vmem>>) attributes {dimension_semantics = [#tpu.dimension_semantics<parallel>], iteration_bounds = array<i64: 2>, scalar_prefetch = 0 : i64, scratch_operands = 0 : i64, tpu.core_type = #tpu.core_type<tc>, window_params = [{transform_indices = @transform_0, window_bounds = array<i64: 24, 32>}, {pipeline_mode = #tpu.pipeline_mode<synchronous>, transform_indices = @transform_1, window_bounds = array<i64: 64, 32>}, {pipeline_mode = #tpu.pipeline_mode<synchronous>, transform_indices = @transform_2, window_bounds = array<i64: 1, 64>}, {transform_indices = @transform_3, window_bounds = array<i64: 24, 32>}, {transform_indices = @transform_4, window_bounds = array<i64: 1, 1, 24>}, {transform_indices = @transform_5, window_bounds = array<i64: 1, 1, 24>}, {transform_indices = @transform_6, window_bounds = array<i64: 1, 1, 64>}]} {
    %c0 = arith.constant 0 : index
    %c0_0 = arith.constant 0 : index
    %0 = vector.load %arg1[%c0, %c0_0] : memref<24x32xf32, #tpu.memory_space<vmem>>, vector<24x32xf32>
    %c24_i32 = arith.constant 24 : i32
    %1 = arith.muli %arg0, %c24_i32 : i32
    %2 = tpu.iota {dimensions = array<i32: 0>} : vector<24x1xi32>
    %3 = vector.broadcast %1 : i32 to vector<24x1xi32>
    %4 = arith.addi %3, %2 : vector<24x1xi32>
    %c40_i32 = arith.constant 40 : i32
    %5 = vector.broadcast %c40_i32 : i32 to vector<24x1xi32>
    %6 = arith.cmpi slt, %4, %5 : vector<24x1xi32>
    %cst = arith.constant 0.000000e+00 : f32
    %7 = vector.shape_cast %6 : vector<24x1xi1> to vector<24x1xi1>
    %8 = vector.broadcast %7 : vector<24x1xi1> to vector<24x32xi1>
    %9 = vector.broadcast %cst : f32 to vector<24x32xf32>
    %10 = arith.select %8, %0, %9 : vector<24x32xi1>, vector<24x32xf32>
    %11 = arith.truncf %10 : vector<24x32xf32> to vector<24x32xbf16>
    %12 = arith.mulf %10, %10 : vector<24x32xf32>
    %cst_1 = arith.constant dense<0.000000e+00> : vector<24xf32>
    %13 = vector.multi_reduction <add>, %12, %cst_1 [1] : vector<24x32xf32> to vector<24xf32>
    %14 = vector.shape_cast %13 : vector<24xf32> to vector<24x1xf32>
    %cst_2 = arith.constant 9.99999996E-13 : f32
    %15 = vector.broadcast %cst_2 : f32 to vector<24x1xf32>
    %16 = arith.cmpf ogt, %14, %15 : vector<24x1xf32>
    %17 = arith.extui %16 : vector<24x1xi1> to vector<24x1xi32>
    %18 = arith.sitofp %17 : vector<24x1xi32> to vector<24x1xf32>
    %c0_3 = arith.constant 0 : index
    %c0_4 = arith.constant 0 : index
    %19 = vector.load %arg2[%c0_3, %c0_4] : memref<64x32xbf16, #tpu.memory_space<vmem>>, vector<64x32xbf16>
    %c0_5 = arith.constant 0 : index
    %c0_6 = arith.constant 0 : index
    %20 = vector.load %arg3[%c0_5, %c0_6] : memref<1x64xf32, #tpu.memory_space<vmem>>, vector<1x64xf32>
    %cst_7 = arith.constant dense<0.000000e+00> : vector<24x64xf32>
    %21 = tpu.matmul %11, %19, %cst_7 {dimension_numbers = #tpu.dot_dimension_numbers<[1], [1], [0], [0], [0, 0, 1, 0], [], []>} : vector<24x32xbf16>, vector<64x32xbf16>, vector<24x64xf32> -> vector<24x64xf32>
    %22 = vector.broadcast %20 : vector<1x64xf32> to vector<24x64xf32>
    %23 = arith.subf %22, %21 : vector<24x64xf32>
    %cst_8 = arith.constant dense<0x7F800000> : vector<24xf32>
    %24 = vector.multi_reduction <minimumf>, %23, %cst_8 [1] : vector<24x64xf32> to vector<24xf32>
    %25 = vector.shape_cast %24 : vector<24xf32> to vector<24x1xf32>
    %26 = tpu.iota {dimensions = array<i32: 1>} : vector<24x64xi32>
    %c0_i32 = arith.constant 0 : i32
    %27 = vector.broadcast %c0_i32 : i32 to vector<24x64xi32>
    %28 = arith.addi %27, %26 : vector<24x64xi32>
    %29 = vector.broadcast %25 : vector<24x1xf32> to vector<24x64xf32>
    %30 = arith.cmpf ole, %23, %29 : vector<24x64xf32>
    %c64_i32 = arith.constant 64 : i32
    %31 = vector.broadcast %c64_i32 : i32 to vector<24x64xi32>
    %32 = arith.select %30, %28, %31 : vector<24x64xi1>, vector<24x64xi32>
    %cst_9 = arith.constant dense<2147483647> : vector<24xi32>
    %33 = vector.multi_reduction <minsi>, %32, %cst_9 [1] : vector<24x64xi32> to vector<24xi32>
    %34 = vector.shape_cast %33 : vector<24xi32> to vector<24x1xi32>
    %cst_10 = arith.constant 1.000000e+00 : bf16
    %35 = vector.broadcast %cst_10 : bf16 to vector<1x24xbf16>
    %c0_11 = arith.constant 0 : index
    %c0_12 = arith.constant 0 : index
    %36 = vector.load %arg2[%c0_11, %c0_12] : memref<64x32xbf16, #tpu.memory_space<vmem>>, vector<64x32xbf16>
    %37 = tpu.iota {dimensions = array<i32: 1>} : vector<24x64xi32>
    %c0_i32_13 = arith.constant 0 : i32
    %38 = vector.broadcast %c0_i32_13 : i32 to vector<24x64xi32>
    %39 = arith.addi %38, %37 : vector<24x64xi32>
    %40 = vector.broadcast %34 : vector<24x1xi32> to vector<24x64xi32>
    %41 = arith.cmpi eq, %39, %40 : vector<24x64xi32>
    %42 = arith.extui %41 : vector<24x64xi1> to vector<24x64xi32>
    %43 = arith.sitofp %42 : vector<24x64xi32> to vector<24x64xf32>
    %44 = vector.broadcast %18 : vector<24x1xf32> to vector<24x64xf32>
    %45 = arith.mulf %43, %44 : vector<24x64xf32>
    %46 = arith.truncf %45 : vector<24x64xf32> to vector<24x64xbf16>
    %cst_14 = arith.constant dense<0.000000e+00> : vector<24x32xf32>
    %47 = tpu.matmul %46, %36, %cst_14 {dimension_numbers = #tpu.dot_dimension_numbers<[1], [0], [0], [1], [0, 0, 1, 1], [], []>} : vector<24x64xbf16>, vector<64x32xbf16>, vector<24x32xf32> -> vector<24x32xf32>
    %48 = tpu.iota {dimensions = array<i32: 1>} : vector<1x64xi32>
    %c0_i32_15 = arith.constant 0 : i32
    %49 = vector.broadcast %c0_i32_15 : i32 to vector<1x64xi32>
    %50 = arith.addi %49, %48 : vector<1x64xi32>
    %51 = arith.sitofp %50 : vector<1x64xi32> to vector<1x64xf32>
    %cst_16 = arith.constant dense<0.000000e+00> : vector<1x24xf32>
    %52 = tpu.matmul %51, %45, %cst_16 {dimension_numbers = #tpu.dot_dimension_numbers<[1], [1], [0], [0], [0, 0, 1, 0], [], []>, precision = #tpu.contract_precision<fp32>} : vector<1x64xf32>, vector<24x64xf32>, vector<1x24xf32> -> vector<1x24xf32>
    %cst_17 = arith.constant dense<0.000000e+00> : vector<1x64xf32>
    %53 = tpu.matmul %35, %46, %cst_17 {dimension_numbers = #tpu.dot_dimension_numbers<[1], [0], [0], [1], [0, 0, 1, 1], [], []>} : vector<1x24xbf16>, vector<24x64xbf16>, vector<1x64xf32> -> vector<1x64xf32>
    %54 = arith.truncf %47 : vector<24x32xf32> to vector<24x32xbf16>
    %c0_18 = arith.constant 0 : index
    %c0_19 = arith.constant 0 : index
    %55 = vector.load %arg4[%c0_18, %c0_19] : memref<24x32xbf16, #tpu.memory_space<vmem>>, vector<24x32xbf16>
    tpu.vector_store %arg4[%c0_18, %c0_19], %54 {strides = array<i32>} : memref<24x32xbf16, #tpu.memory_space<vmem>>, vector<24x32xbf16>,
    %56 = arith.subf %47, %10 : vector<24x32xf32>
    %57 = vector.broadcast %18 : vector<24x1xf32> to vector<24x32xf32>
    %58 = arith.mulf %56, %57 : vector<24x32xf32>
    %cst_20 = arith.constant 1.000000e+00 : f32
    %59 = vector.broadcast %cst_20 : f32 to vector<1x32xf32>
    %60 = arith.mulf %58, %58 : vector<24x32xf32>
    %cst_21 = arith.constant dense<0.000000e+00> : vector<1x24xf32>
    %61 = tpu.matmul %59, %60, %cst_21 {dimension_numbers = #tpu.dot_dimension_numbers<[1], [1], [0], [0], [0, 0, 1, 0], [], []>} : vector<1x32xf32>, vector<24x32xf32>, vector<1x24xf32> -> vector<1x24xf32>
    %cst_22 = arith.constant 5.000000e-01 : f32
    %62 = vector.broadcast %cst_22 : f32 to vector<1x24xf32>
    %63 = arith.addf %52, %62 : vector<1x24xf32>
    %64 = arith.fptosi %63 : vector<1x24xf32> to vector<1x24xi32>
    %65 = vector.shape_cast %64 : vector<1x24xi32> to vector<1x1x24xi32>
    %c0_23 = arith.constant 0 : index
    %c0_24 = arith.constant 0 : index
    %c0_25 = arith.constant 0 : index
    %66 = vector.load %arg5[%c0_23, %c0_24, %c0_25] : memref<1x1x24xi32, #tpu.memory_space<vmem>>, vector<1x1x24xi32>
    tpu.vector_store %arg5[%c0_23, %c0_24, %c0_25], %65 {strides = array<i32>} : memref<1x1x24xi32, #tpu.memory_space<vmem>>, vector<1x1x24xi32>,
    %67 = vector.shape_cast %61 : vector<1x24xf32> to vector<1x1x24xf32>
    %c0_26 = arith.constant 0 : index
    %c0_27 = arith.constant 0 : index
    %c0_28 = arith.constant 0 : index
    %68 = vector.load %arg6[%c0_26, %c0_27, %c0_28] : memref<1x1x24xf32, #tpu.memory_space<vmem>>, vector<1x1x24xf32>
    tpu.vector_store %arg6[%c0_26, %c0_27, %c0_28], %67 {strides = array<i32>} : memref<1x1x24xf32, #tpu.memory_space<vmem>>, vector<1x1x24xf32>,
    %69 = vector.shape_cast %53 : vector<1x64xf32> to vector<1x1x64xf32>
    %c0_29 = arith.constant 0 : index
    %c0_30 = arith.constant 0 : index
    %c0_31 = arith.constant 0 : index
    %70 = vector.load %arg7[%c0_29, %c0_30, %c0_31] : memref<1x1x64xf32, #tpu.memory_space<vmem>>, vector<1x1x64xf32>
    tpu.vector_store %arg7[%c0_29, %c0_30, %c0_31], %69 {strides = array<i32>} : memref<1x1x64xf32, #tpu.memory_space<vmem>>, vector<1x1x64xf32>,
    return
  }
  func.func @transform_0(%arg0: i32) -> (i32, i32) {
    %c0_i32 = arith.constant 0 : i32
    %c0_i32_0 = arith.constant 0 : i32
    return %arg0, %c0_i32 : i32, i32
  }
  func.func @transform_1(%arg0: i32) -> (i32, i32) {
    %c0_i32 = arith.constant 0 : i32
    %c0_i32_0 = arith.constant 0 : i32
    %c0_i32_1 = arith.constant 0 : i32
    return %c0_i32, %c0_i32_0 : i32, i32
  }
  func.func @transform_2(%arg0: i32) -> (i32, i32) {
    %c0_i32 = arith.constant 0 : i32
    %c0_i32_0 = arith.constant 0 : i32
    %c0_i32_1 = arith.constant 0 : i32
    return %c0_i32, %c0_i32_0 : i32, i32
  }
  func.func @transform_3(%arg0: i32) -> (i32, i32) {
    %c0_i32 = arith.constant 0 : i32
    %c0_i32_0 = arith.constant 0 : i32
    return %arg0, %c0_i32 : i32, i32
  }
  func.func @transform_4(%arg0: i32) -> (i32, i32, i32) {
    %c0_i32 = arith.constant 0 : i32
    %c0_i32_0 = arith.constant 0 : i32
    %c0_i32_1 = arith.constant 0 : i32
    return %arg0, %c0_i32, %c0_i32_0 : i32, i32, i32
  }
  func.func @transform_5(%arg0: i32) -> (i32, i32, i32) {
    %c0_i32 = arith.constant 0 : i32
    %c0_i32_0 = arith.constant 0 : i32
    %c0_i32_1 = arith.constant 0 : i32
    return %arg0, %c0_i32, %c0_i32_0 : i32, i32, i32
  }
  func.func @transform_6(%arg0: i32) -> (i32, i32, i32) {
    %c0_i32 = arith.constant 0 : i32
    %c0_i32_0 = arith.constant 0 : i32
    %c0_i32_1 = arith.constant 0 : i32
    return %arg0, %c0_i32, %c0_i32_0 : i32, i32, i32
  }
}

</mosaic_0001>

<llo_original>
// kernel: vector_quantizer_forward.1
$region0: #{vector_quantizer_forward.1}
  #allocation0 [shape = 'u32[]', space=smem, size = 0x4, offset = 0x4, fixed_abs, tag = 'smem constant byte address 0x4 - core index']
  #allocation1 [shape = 'u32[144,128]{1,0:T(1,128)}', space=vmem, size = 0x12000, scoped, tag = 'internal scratch']
  %s0 = inlined_call_operand.vmem [shape: f32[40,32], index: 0, kind: input, shape index: {}]
  %s1 = inlined_call_operand.vmem [shape: bf16[64,32], index: 1, kind: input, shape index: {}]
  %s2 = inlined_call_operand.vmem [shape: f32[1,64], index: 2, kind: input, shape index: {}]
  %s3 = inlined_call_operand.vmem [shape: bf16[40,32], index: 3, kind: output, shape index: {0}]
  %s4 = inlined_call_operand.vmem [shape: s32[2,1,24], index: 4, kind: output, shape index: {1}]
  %s5 = inlined_call_operand.vmem [shape: f32[2,1,24], index: 5, kind: output, shape index: {2}]
  %s6 = inlined_call_operand.vmem [shape: f32[2,1,64], index: 6, kind: output, shape index: {3}]
  %7 = xla_tuple %s3, %s4, %s5, %s6
  %s8 = sld [smem:[#allocation0]]
  $region113: #{vector_quantizer_forward.1} parent=0
    _
  %s10 = ssub.s32 1, %s8
  %s11 = scalar_select 0, %s10, %s8
  $region1: #{vector_quantizer_forward.1} parent=0
    #allocation2 [shape = 'u8[12288]{0}', space=vmem, size = 0x3000, scoped, tag = 'output window, operand 0']
    loop: start=0, step=1, limit=4
    $region2: #{vector_quantizer_forward.1} parent=1 // loop_pre_header
      _
    $region3: #{vector_quantizer_forward.1} parent=1 // loop_header
      %s13 = sphi 0, %s17
      %p14 = scmp.ge.s32.totalorder %s13, 4
      %s23 = sphi 0, %s25
      %s26 = sphi 0, %s23
      %s27 = sphi 0, %s26
      %s43 = sphi 0, %s27
      %s47 = sphi 0, %s47
      %s49 = sphi 0, %s47
      %s50 = sphi 0, %s49
      %s64 = sphi 0, %s50
      %s68 = sphi 0, %s68
      %s70 = sphi 0, %s68
      %s71 = sphi 0, %s70
      %s85 = sphi 0, %s71
      %s91 = sphi 0, %s93
      %s94 = sphi 0, %s91
      %s95 = sphi 0, %s94
      %s111 = sphi 0, %s95
      %s117 = sphi 0, %s119
      %s120 = sphi 0, %s117
      %s121 = sphi 0, %s120
      %s137 = sphi 0, %s121
      %s143 = sphi 0, %s145
      %s146 = sphi 0, %s143
      %s147 = sphi 0, %s146
      %s163 = sphi 0, %s147
      %s169 = sphi 0, %s171
      %s172 = sphi 0, %s169
      %s173 = sphi 0, %s172
      %s189 = sphi 0, %s173
    $region4: #{vector_quantizer_forward.1} parent=1 // loop_header_branch
      %16 = sbr.rel (%p14) target = $region8
    $region5: #{vector_quantizer_forward.1} parent=1 // loop_body
      %s18 = ssub.s32 %s13, 1
      %s19 = ssub.s32 %s13, 2
      %s20 = sadd.s32 %s13, 1
      %s21 = ssub.s32 %s13, %s20
      %p22 = scmp.eq.s32.totalorder %s21, 0
      %s24 = sadd.s32 %s23, 1
      %s25 = scalar_select %p22, %s23, %s24
      %p28 = pneg %p22
      %p29 = scmp.eq.s32.totalorder %s13, 1
      %p30 = por %p28, %p29
      %p31 = scmp.ne.s32.totalorder %s23, %s26
      %p32 = scmp.eq.s32.totalorder %s13, 0
      %p33 = por %p31, %p32
      %p34 = scmp.ne.s32.totalorder %s23, %s26
      %p35 = scmp.eq.s32.totalorder %s18, 1
      %p36 = por %p34, %p35
      %p37 = scmp.ne.s32.totalorder %s26, %s27
      %p38 = scmp.eq.s32.totalorder %s18, 0
      %p39 = por %p37, %p38
      %p40 = scmp.ne.s32.totalorder %s26, %s27
      %p41 = scmp.eq.s32.totalorder %s19, 1
      %p42 = por %p40, %p41
      %p44 = scmp.ne.s32.totalorder %s27, %s43
      %p45 = scmp.eq.s32.totalorder %s19, 0
      %p46 = por %p44, %p45
      %s48 = sadd.s32 %s47, 1
      %p51 = scmp.eq.s32.totalorder %s13, 1
      %p52 = scmp.ne.s32.totalorder %s47, %s49
      %p53 = scmp.eq.s32.totalorder %s13, 0
      %p54 = por %p52, %p53
      %p55 = scmp.ne.s32.totalorder %s47, %s49
      %p56 = scmp.eq.s32.totalorder %s18, 1
      %p57 = por %p55, %p56
      %p58 = scmp.ne.s32.totalorder %s49, %s50
      %p59 = scmp.eq.s32.totalorder %s18, 0
      %p60 = por %p58, %p59
      %p61 = scmp.ne.s32.totalorder %s49, %s50
      %p62 = scmp.eq.s32.totalorder %s19, 1
      %p63 = por %p61, %p62
      %p65 = scmp.ne.s32.totalorder %s50, %s64
      %p66 = scmp.eq.s32.totalorder %s19, 0
      %p67 = por %p65, %p66
      %s69 = sadd.s32 %s68, 1
      %p72 = scmp.eq.s32.totalorder %s13, 1
      %p73 = scmp.ne.s32.totalorder %s68, %s70
      %p74 = scmp.eq.s32.totalorder %s13, 0
      %p75 = por %p73, %p74
      %p76 = scmp.ne.s32.totalorder %s68, %s70
      %p77 = scmp.eq.s32.totalorder %s18, 1
      %p78 = por %p76, %p77
      %p79 = scmp.ne.s32.totalorder %s70, %s71
      %p80 = scmp.eq.s32.totalorder %s18, 0
      %p81 = por %p79, %p80
      %p82 = scmp.ne.s32.totalorder %s70, %s71
      %p83 = scmp.eq.s32.totalorder %s19, 1
      %p84 = por %p82, %p83
      %p86 = scmp.ne.s32.totalorder %s71, %s85
      %p87 = scmp.eq.s32.totalorder %s19, 0
      %p88 = por %p86, %p87
      %s89 = ssub.s32 %s13, %s20
      %p90 = scmp.eq.s32.totalorder %s89, 0
      %s92 = sadd.s32 %s91, 1
      %s93 = scalar_select %p90, %s91, %s92
      %p96 = pneg %p90
      %p97 = scmp.eq.s32.totalorder %s13, 1
      %p98 = por %p96, %p97
      %p99 = scmp.ne.s32.totalorder %s91, %s94
      %p100 = scmp.eq.s32.totalorder %s13, 0
      %p101 = por %p99, %p100
      %p102 = scmp.ne.s32.totalorder %s91, %s94
      %p103 = scmp.eq.s32.totalorder %s18, 1
      %p104 = por %p102, %p103
      %p105 = scmp.ne.s32.totalorder %s94, %s95
      %p106 = scmp.eq.s32.totalorder %s18, 0
      %p107 = por %p105, %p106
      %p108 = scmp.ne.s32.totalorder %s94, %s95
      %p109 = scmp.eq.s32.totalorder %s19, 1
      %p110 = por %p108, %p109
      %p112 = scmp.ne.s32.totalorder %s95, %s111
      %p113 = scmp.eq.s32.totalorder %s19, 0
      %p114 = por %p112, %p113
      %s115 = ssub.s32 %s13, %s20
      %p116 = scmp.eq.s32.totalorder %s115, 0
      %s118 = sadd.s32 %s117, 1
      %s119 = scalar_select %p116, %s117, %s118
      %p122 = pneg %p116
      %p123 = scmp.eq.s32.totalorder %s13, 1
      %p124 = por %p122, %p123
      %p125 = scmp.ne.s32.totalorder %s117, %s120
      %p126 = scmp.eq.s32.totalorder %s13, 0
      %p127 = por %p125, %p126
      %p128 = scmp.ne.s32.totalorder %s117, %s120
      %p129 = scmp.eq.s32.totalorder %s18, 1
      %p130 = por %p128, %p129
      %p131 = scmp.ne.s32.totalorder %s120, %s121
      %p132 = scmp.eq.s32.totalorder %s18, 0
      %p133 = por %p131, %p132
      %p134 = scmp.ne.s32.totalorder %s120, %s121
      %p135 = scmp.eq.s32.totalorder %s19, 1
      %p136 = por %p134, %p135
      %p138 = scmp.ne.s32.totalorder %s121, %s137
      %p139 = scmp.eq.s32.totalorder %s19, 0
      %p140 = por %p138, %p139
      %s141 = ssub.s32 %s13, %s20
      %p142 = scmp.eq.s32.totalorder %s141, 0
      %s144 = sadd.s32 %s143, 1
      %s145 = scalar_select %p142, %s143, %s144
      %p148 = pneg %p142
      %p149 = scmp.eq.s32.totalorder %s13, 1
      %p150 = por %p148, %p149
      %p151 = scmp.ne.s32.totalorder %s143, %s146
      %p152 = scmp.eq.s32.totalorder %s13, 0
      %p153 = por %p151, %p152
      %p154 = scmp.ne.s32.totalorder %s143, %s146
      %p155 = scmp.eq.s32.totalorder %s18, 1
      %p156 = por %p154, %p155
      %p157 = scmp.ne.s32.totalorder %s146, %s147
      %p158 = scmp.eq.s32.totalorder %s18, 0
      %p159 = por %p157, %p158
      %p160 = scmp.ne.s32.totalorder %s146, %s147
      %p161 = scmp.eq.s32.totalorder %s19, 1
      %p162 = por %p160, %p161
      %p164 = scmp.ne.s32.totalorder %s147, %s163
      %p165 = scmp.eq.s32.totalorder %s19, 0
      %p166 = por %p164, %p165
      %s167 = ssub.s32 %s13, %s20
      %p168 = scmp.eq.s32.totalorder %s167, 0
      %s170 = sadd.s32 %s169, 1
      %s171 = scalar_select %p168, %s169, %s170
      %p174 = pneg %p168
      %p175 = scmp.eq.s32.totalorder %s13, 1
      %p176 = por %p174, %p175
      %p177 = scmp.ne.s32.totalorder %s169, %s172
      %p178 = scmp.eq.s32.totalorder %s13, 0
      %p179 = por %p177, %p178
      %p180 = scmp.ne.s32.totalorder %s169, %s172
      %p181 = scmp.eq.s32.totalorder %s18, 1
      %p182 = por %p180, %p181
      %p183 = scmp.ne.s32.totalorder %s172, %s173
      %p184 = scmp.eq.s32.totalorder %s18, 0
      %p185 = por %p183, %p184
      %p186 = scmp.ne.s32.totalorder %s172, %s173
      %p187 = scmp.eq.s32.totalorder %s19, 1
      %p188 = por %p186, %p187
      %p190 = scmp.ne.s32.totalorder %s173, %s189
      %p191 = scmp.eq.s32.totalorder %s19, 0
      %p192 = por %p190, %p191
      %p193 = scmp.le.s32.totalorder 1, %s13
      %p194 = scmp.lt.s32.totalorder %s13, 3
      %p195 = pnand %p193, %p194
      %p196 = pneg %p195
      // Predicated region
      $region9: #{vector_quantizer_forward.1} parent=5 // pred_check
        _
      $region10: #{vector_quantizer_forward.1} parent=5 // pred_check_branch
        %198 = sbr.rel (%p195) target = $region12
      $region11: #{vector_quantizer_forward.1} parent=5 // pred_region
        %s199 = ssub.s32 %s13, 1
        // Predicated region
        $region13: #{vector_quantizer_forward.1} parent=11 // pred_check
          %p200 = pneg %p60
        $region14: #{vector_quantizer_forward.1} parent=11 // pred_check_branch
          %202 = sbr.rel (%p200) target = $region16
        $region15: #{vector_quantizer_forward.1} parent=11 // pred_region
          _
        $region16: #{vector_quantizer_forward.1} parent=11 // pred_fallthru
          _
        // Predicated region
        $region17: #{vector_quantizer_forward.1} parent=11 // pred_check
          %p203 = pneg %p81
        $region18: #{vector_quantizer_forward.1} parent=11 // pred_check_branch
          %205 = sbr.rel (%p203) target = $region20
        $region19: #{vector_quantizer_forward.1} parent=11 // pred_region
          _
        $region20: #{vector_quantizer_forward.1} parent=11 // pred_fallthru
          _
      $region12: #{vector_quantizer_forward.1} parent=5 // pred_fallthru
        _
      %p206 = scmp.lt.s32.totalorder %s13, 2
      // Predicated region
      $region21: #{vector_quantizer_forward.1} parent=5 // pred_check
        %p207 = pneg %p206
      $region22: #{vector_quantizer_forward.1} parent=5 // pred_check_branch
        %209 = sbr.rel (%p207) target = $region24
      $region23: #{vector_quantizer_forward.1} parent=5 // pred_region
        // Predicated region
        $region25: #{vector_quantizer_forward.1} parent=23 // pred_check
          %p210 = pneg %p33
        $region26: #{vector_quantizer_forward.1} parent=23 // pred_check_branch
          %212 = sbr.rel (%p210) target = $region28
        $region27: #{vector_quantizer_forward.1} parent=23 // pred_region
          %s213 = smul.u32 3, %s13
          %s214 = ssub.s32 5, %s213
          %p215 = scmp.lt.s32.totalorder %s214, 3
          %s216 = scalar_select %p215, %s214, 3
          %s217 = smul.u32 128, %s216
          %p218 = scmp.lt.s32.totalorder %s213, 4
          %s219 = scalar_select %p218, %s213, 4
          %s220 = smul.addr %s219, 8
          %s221 = scalar_lea.vmem %s0, %s220
          %s222 = smul.u32 3, %s13
          %s223 = ssub.s32 5, %s222
          %p224 = scmp.lt.s32.totalorder %s223, 3
          %s225 = scalar_select %p224, %s223, 3
          %s226 = smul.u32 128, %s225
        $region28: #{vector_quantizer_forward.1} parent=23 // pred_fallthru
          _
      $region24: #{vector_quantizer_forward.1} parent=5 // pred_fallthru
        _
      %p227 = scmp.le.s32.totalorder 1, %s13
      %p228 = scmp.lt.s32.totalorder %s13, 3
      %p229 = pnand %p227, %p228
      %p230 = pneg %p229
      // Predicated region
      $region29: #{vector_quantizer_forward.1} parent=5 // pred_check
        _
      $region30: #{vector_quantizer_forward.1} parent=5 // pred_check_branch
        %232 = sbr.rel (%p229) target = $region32
      $region31: #{vector_quantizer_forward.1} parent=5 // pred_region
        %s233 = ssub.s32 %s13, 1
        %s234 = smul.u32 3, %s18
        %s235 = ssub.s32 5, %s234
        %p236 = scmp.lt.s32.totalorder %s235, 3
        %s237 = scalar_select %p236, %s235, 3
        %s238 = smul.u32 128, %s237
        %p239 = scmp.lt.s32.totalorder %s234, 4
        %s240 = scalar_select %p239, %s234, 4
        %s241 = smul.addr %s240, 8
        %s242 = scalar_lea.vmem %s0, %s241
        %p243 = pneg %p39
        %p244 = pneg %p36
        %p245 = pneg %p60
        %p246 = pneg %p57
        %p247 = pneg %p81
        %p248 = pneg %p78
        %p249 = pneg %p107
        %p250 = pneg %p104
        %s251 = sand.u32 %s94, 1
        %s252 = sand.u32 %s94, 1
        %s253 = smul.addr %s252, 12
        %s254 = scalar_lea.vmem [#allocation2], %s253
        %p255 = pneg %p133
        %p256 = pneg %p130
        %p257 = scmp.lt.s32.totalorder %s18, 1
        %s258 = scalar_select %p257, %s18, 1
        %s259 = scalar_lea.vmem %s4, %s258
        %p260 = pneg %p159
        %p261 = pneg %p156
        %p262 = scmp.lt.s32.totalorder %s18, 1
        %s263 = scalar_select %p262, %s18, 1
        %s264 = scalar_lea.vmem %s5, %s263
        %p265 = pneg %p185
        %p266 = pneg %p182
        %p267 = scmp.lt.s32.totalorder %s18, 1
        %s268 = scalar_select %p267, %s18, 1
        %s269 = scalar_lea.vmem %s6, %s268
        %s270 = smul.u32 3, %s18
        %s271 = ssub.s32 5, %s270
        %p272 = scmp.lt.s32.totalorder %s271, 3
        %s273 = scalar_select %p272, %s271, 3
        %s274 = smul.u32 128, %s273
        %p275 = scmp.lt.s32.totalorder %s270, 4
        %s276 = scalar_select %p275, %s270, 4
        %s277 = smul.addr %s276, 8
        %s278 = scalar_lea.vmem %s0, %s277
        %s279 = smul.u32 3, %s18
        %s280 = ssub.s32 5, %s279
        %p281 = scmp.lt.s32.totalorder %s280, 3
        %s282 = scalar_select %p281, %s280, 3
        %s283 = smul.u32 128, %s282
        %s284 = smul.u32 3, %s18
        %s285 = ssub.s32 5, %s284
        %p286 = scmp.lt.s32.totalorder %s285, 3
        %s287 = scalar_select %p286, %s285, 3
        %s288 = smul.u32 64, %s287
        %p289 = scmp.lt.s32.totalorder %s18, 1
        %s290 = scalar_select %p289, %s18, 1
        %s291 = scalar_lea.vmem %s4, %s290
        %p292 = scmp.lt.s32.totalorder %s18, 1
        %s293 = scalar_select %p292, %s18, 1
        %s294 = scalar_lea.vmem %s5, %s293
        %p295 = scmp.lt.s32.totalorder %s18, 1
        %s296 = scalar_select %p295, %s18, 1
        %s297 = scalar_lea.vmem %s6, %s296
        %v300 = vld [vmem:[%s278] sm:$0xff]
        %v301 = vld [vmem:[%s278 + $0x8] sm:$0xff]
        %v302 = vld [vmem:[%s278 + $0x10] sm:$0xff]
        %s303 = smul.u32 %s18, 24
        %v304 = vlaneseq
        %v305 = vshrl.u32 %v304, 7
        %v306 = vadd.s32 %v305, 8
        %v307 = vadd.s32 %v305, 16
        %v308 = vstv %s303
        %v309 = vadd.s32 %v308, %v305
        %v310 = vadd.s32 %v308, %v306
        %v311 = vadd.s32 %v308, %v307
        %vm312 = vcmp.lt.s32.totalorder %v309, 40
        %vm313 = vcmp.lt.s32.totalorder %v310, 40
        %vm314 = vcmp.lt.s32.totalorder %v311, 40
        %v315 = vsel %vm312, 1, 0
        %v316 = vsel %vm313, 1, 0
        %v317 = vsel %vm314, 1, 0
        %vm318 = vcmp.eq.s32.totalorder %v315, 1
        %vm319 = vcmp.eq.s32.totalorder %v316, 1
        %vm320 = vcmp.eq.s32.totalorder %v317, 1
        %v321 = vsel %vm318, %v300, 0.0
        %v322 = vsel %vm319, %v301, 0.0
        %v323 = vsel %vm320, %v302, 0.0
        %v324 = vpack.c.bf16 %v322, %v321
        %v325 = vpack.c.bf16 %v323, %v323
        %v326 = vmul.f32 %v321, %v321
        %v327 = vmul.f32 %v322, %v322
        %v328 = vmul.f32 %v323, %v323
        %vm329 = vcmask 261120
        %v330 = vsel %vm329, %v326, 0.0
        %331 = vadd.xlane.f32.xlu0 %v330
        %v332 = vpop.xlane.xlu0 %331
        %v333 = vsel %vm329, %v327, 0.0
        %334 = vadd.xlane.f32.xlu0 %v333
        %v335 = vpop.xlane.xlu0 %334
        %v336 = vsel %vm329, %v328, 0.0
        %337 = vadd.xlane.f32.xlu0 %v336
        %v338 = vpop.xlane.xlu0 %337
        %vm339 = vcmp.gt.f32.partialorder %v332, 1e-12
        %vm340 = vcmp.gt.f32.partialorder %v335, 1e-12
        %vm341 = vcmp.gt.f32.partialorder %v338, 1e-12
        %v342 = vsel %vm339, 1, 0
        %v343 = vsel %vm340, 1, 0
        %v344 = vsel %vm341, 1, 0
        %v345 = vcvt.s32.f32 %v342
        %v346 = vcvt.s32.f32 %v343
        %v347 = vcvt.s32.f32 %v344
        %v348 = vld [vmem:[%s1] sm:$0xf]
        %v349 = vld [vmem:[%s1 + $0x4] sm:$0xf]
        %v350 = vld [vmem:[%s1 + $0x8] sm:$0xf]
        %v351 = vld [vmem:[%s1 + $0xc] sm:$0xf]
        %v352 = vld [vmem:[%s1 + $0x10] sm:$0xf]
        %v353 = vld [vmem:[%s1 + $0x14] sm:$0xf]
        %v354 = vld [vmem:[%s1 + $0x18] sm:$0xf]
        %v355 = vld [vmem:[%s1 + $0x1c] sm:$0xf]
        %v356 = vld [vmem:[%s2] sm:$0x1]
        %v365 = vunpack.c.l.b16 %v348
        %v366 = vunpack.c.l.b16 %v349
        %v367 = vunpack.c.l.b16 %v350
        %v368 = vunpack.c.l.b16 %v351
        %v369 = vunpack.c.l.b16 %v352
        %v370 = vunpack.c.l.b16 %v353
        %v371 = vunpack.c.l.b16 %v354
        %v372 = vunpack.c.l.b16 %v355
        %v373 = vpack.c.b16 %v366, %v365
        %v374 = vpack.c.b16 %v368, %v367
        %v375 = vpack.c.b16 %v370, %v369
        %v376 = vpack.c.b16 %v372, %v371
        %v378 = vsel %vm329, %v324, 0
        %v381 = vsel %vm329, %v325, 0
        %v384 = vsel %vm329, %v373, 0
        %v387 = vsel %vm329, %v374, 0
        %v390 = vsel %vm329, %v375, 0
        %v393 = vsel %vm329, %v376, 0
        %395 = vmatprep.subr.bf16.mxu0 0
        %396 = vmatpush1.bf16.xpose.msra.mxu0 %v384
        %397 = vmatprep.subr.bf16.mxu0 0
        %398 = vmatpush1.bf16.xpose.msra.mxu0 %v387
        %399 = vmatprep.subr.bf16.mxu0 0
        %400 = vmatpush1.bf16.xpose.msra.mxu0 %v390
        %401 = vmatprep.subr.bf16.mxu0 0
        %402 = vmatpush1.bf16.xpose.msra.mxu0 %v393
        %403 = vmatprep.subr.bf16.mxu0 0
        %404 = vmatpush1.bf16.xpose.msra.mxu0 0
        %405 = vmatprep.subr.bf16.mxu0 0
        %406 = vmatpush1.bf16.xpose.msra.mxu0 0
        %407 = vmatprep.subr.bf16.mxu0 0
        %408 = vmatpush1.bf16.xpose.msra.mxu0 0
        %409 = vmatprep.subr.bf16.mxu0 0
        %410 = vmatpush1.bf16.xpose.msra.mxu0 0
        %411 = vmatprep.subr.bf16.mxu0 0
        %412 = vmatpush1.bf16.xpose.msra.mxu0 0
        %413 = vmatprep.subr.bf16.mxu0 0
        %414 = vmatpush1.bf16.xpose.msra.mxu0 0
        %415 = vmatprep.subr.bf16.mxu0 0
        %416 = vmatpush1.bf16.xpose.msra.mxu0 0
        %417 = vmatprep.subr.bf16.mxu0 0
        %418 = vmatpush1.bf16.xpose.msra.mxu0 0
        %419 = vmatprep.subr.bf16.mxu0 0
        %420 = vmatpush1.bf16.xpose.msra.mxu0 0
        %421 = vmatprep.subr.bf16.mxu0 0
        %422 = vmatpush1.bf16.xpose.msra.mxu0 0
        %423 = vmatprep.subr.bf16.mxu0 0
        %424 = vmatpush1.bf16.xpose.msra.mxu0 0
        %425 = vmatprep.subr.bf16.mxu0 0
        %426 = vmatpush1.bf16.xpose.msra.mxu0 0
        %427 = vmatprep.mubr.bf16.mxu0 0
        %428 = vmatmul.mubr.bf16.gmra.mrb[0].mxu0 %v378
        %v429 = vpop.f32.mrb[0].mxu0
        %v430 = vadd.f32 0.0, %v429
        %v431 = vpop.f32.mrb[0].mxu0
        %v432 = vpop.f32.mrb[0].mxu0
        %v433 = vadd.f32 0.0, %v432
        %v434 = vpop.f32.mrb[0].mxu0
        %435 = vmatprep.mubr.bf16.mxu0 0
        %436 = vmatmul.mubr.bf16.gmra.mrb[0].mxu0 %v381
        %v437 = vpop.f32.mrb[0].mxu0
        %v438 = vadd.f32 0.0, %v437
        %v439 = vpop.f32.mrb[0].mxu0
        %v440 = vpop.f32.mrb[0].mxu0
        %v441 = vpop.f32.mrb[0].mxu0
        %442 = vdwg.mxu0
        %v444 = vlaneseq
        %v445 = vshrl.u32 %v444, 7
        %v446 = vsub.s32 0, %v445
        %v447 = vrot.slane %v356, %v446
        %v449 = vsub.f32 %v447, %v430
        %v450 = vsub.f32 %v447, %v433
        %v451 = vsub.f32 %v447, %v438
        %vm452 = vcmask 523264
        %v453 = vsel %vm452, %v449, inf
        %454 = vmin.xlane.f32.xlu0 %v453
        %v455 = vpop.xlane.xlu0 %454
        %v456 = vsel %vm452, %v450, inf
        %457 = vmin.xlane.f32.xlu0 %v456
        %v458 = vpop.xlane.xlu0 %457
        %v459 = vsel %vm452, %v451, inf
        %460 = vmin.xlane.f32.xlu0 %v459
        %v461 = vpop.xlane.xlu0 %460
        %v462 = vlaneseq
        %v463 = vand.u32 %v462, 127
        %vm464 = vcmp.le.f32.partialorder %v449, %v455
        %vm465 = vcmp.le.f32.partialorder %v450, %v458
        %vm466 = vcmp.le.f32.partialorder %v451, %v461
        %v467 = vsel %vm464, %v463, 64
        %v468 = vsel %vm465, %v463, 64
        %v469 = vsel %vm466, %v463, 64
        %v470 = vsel %vm452, %v467, 2147483647
        %v471 = vand.u32 %v470, 65535
        %v472 = vshra.s32 %v470, 16
        %v473 = vcvt.s32.f32 %v471
        %v474 = vcvt.s32.f32 %v472
        %475 = vmin.xlane.f32.xlu0 %v474
        %v476 = vpop.xlane.xlu0 %475
        %vm477 = vcmp.eq.f32.partialorder %v474, %v476
        %v478 = vsel %vm477, %v473, inf
        %479 = vmin.xlane.f32.xlu0 %v478
        %v480 = vpop.xlane.xlu0 %479
        %v481 = vcvt.f32.s32 %v480
        %v482 = vcvt.f32.s32 %v476
        %v483 = vshll.u32 %v482, 16
        %v484 = vadd.s32 %v483, %v481
        %v485 = vsel %vm452, %v468, 2147483647
        %v486 = vand.u32 %v485, 65535
        %v487 = vshra.s32 %v485, 16
        %v488 = vcvt.s32.f32 %v486
        %v489 = vcvt.s32.f32 %v487
        %490 = vmin.xlane.f32.xlu0 %v489
        %v491 = vpop.xlane.xlu0 %490
        %vm492 = vcmp.eq.f32.partialorder %v489, %v491
        %v493 = vsel %vm492, %v488, inf
        %494 = vmin.xlane.f32.xlu0 %v493
        %v495 = vpop.xlane.xlu0 %494
        %v496 = vcvt.f32.s32 %v495
        %v497 = vcvt.f32.s32 %v491
        %v498 = vshll.u32 %v497, 16
        %v499 = vadd.s32 %v498, %v496
        %v500 = vsel %vm452, %v469, 2147483647
        %v501 = vand.u32 %v500, 65535
        %v502 = vshra.s32 %v500, 16
        %v503 = vcvt.s32.f32 %v501
        %v504 = vcvt.s32.f32 %v502
        %505 = vmin.xlane.f32.xlu0 %v504
        %v506 = vpop.xlane.xlu0 %505
        %vm507 = vcmp.eq.f32.partialorder %v504, %v506
        %v508 = vsel %vm507, %v503, inf
        %509 = vmin.xlane.f32.xlu0 %v508
        %v510 = vpop.xlane.xlu0 %509
        %v511 = vcvt.f32.s32 %v510
        %v512 = vcvt.f32.s32 %v506
        %v513 = vshll.u32 %v512, 16
        %v514 = vadd.s32 %v513, %v511
        %vm515 = vcmp.eq.s32.totalorder %v463, %v484
        %vm516 = vcmp.eq.s32.totalorder %v463, %v499
        %vm517 = vcmp.eq.s32.totalorder %v463, %v514
        %v518 = vsel %vm515, 1, 0
        %v519 = vsel %vm516, 1, 0
        %v520 = vsel %vm517, 1, 0
        %v521 = vcvt.s32.f32 %v518
        %v522 = vcvt.s32.f32 %v519
        %v523 = vcvt.s32.f32 %v520
        %v524 = vmul.f32 %v521, %v345
        %v525 = vmul.f32 %v522, %v346
        %v526 = vmul.f32 %v523, %v347
        %v527 = vpack.c.bf16 %v525, %v524
        %v528 = vpack.c.bf16 %v526, %v526
        %v534 = vsel %vm452, %v527, 0
        %v537 = vsel %vm452, %v528, 0
        %539 = vmatprep.subr.bf16.mxu0 0
        %540 = vmatpush1.bf16.msra.mxu0 %v373
        %541 = vmatprep.subr.bf16.mxu0 0
        %542 = vmatpush1.bf16.msra.mxu0 %v374
        %543 = vmatprep.subr.bf16.mxu0 0
        %544 = vmatpush1.bf16.msra.mxu0 %v375
        %545 = vmatprep.subr.bf16.mxu0 0
        %546 = vmatpush1.bf16.msra.mxu0 %v376
        %547 = vmatprep.subr.bf16.mxu0 0
        %548 = vmatpush1.bf16.msra.mxu0 0
        %549 = vmatprep.subr.bf16.mxu0 0
        %550 = vmatpush1.bf16.msra.mxu0 0
        %551 = vmatprep.subr.bf16.mxu0 0
        %552 = vmatpush1.bf16.msra.mxu0 0
        %553 = vmatprep.subr.bf16.mxu0 0
        %554 = vmatpush1.bf16.msra.mxu0 0
        %555 = vmatprep.subr.bf16.mxu0 0
        %556 = vmatpush1.bf16.msra.mxu0 0
        %557 = vmatprep.subr.bf16.mxu0 0
        %558 = vmatpush1.bf16.msra.mxu0 0
        %559 = vmatprep.subr.bf16.mxu0 0
        %560 = vmatpush1.bf16.msra.mxu0 0
        %561 = vmatprep.subr.bf16.mxu0 0
        %562 = vmatpush1.bf16.msra.mxu0 0
        %563 = vmatprep.subr.bf16.mxu0 0
        %564 = vmatpush1.bf16.msra.mxu0 0
        %565 = vmatprep.subr.bf16.mxu0 0
        %566 = vmatpush1.bf16.msra.mxu0 0
        %567 = vmatprep.subr.bf16.mxu0 0
        %568 = vmatpush1.bf16.msra.mxu0 0
        %569 = vmatprep.subr.bf16.mxu0 0
        %570 = vmatpush1.bf16.msra.mxu0 0
        %571 = vmatprep.mubr.bf16.mxu0 0
        %572 = vmatmul.mubr.bf16.gmra.mrb[0].mxu0 %v534
        %v573 = vpop.f32.mrb[0].mxu0
        %v574 = vadd.f32 0.0, %v573
        %v575 = vpop.f32.mrb[0].mxu0
        %v576 = vpop.f32.mrb[0].mxu0
        %v577 = vadd.f32 0.0, %v576
        %v578 = vpop.f32.mrb[0].mxu0
        %579 = vmatprep.mubr.bf16.mxu0 0
        %580 = vmatmul.mubr.bf16.gmra.mrb[0].mxu0 %v537
        %v581 = vpop.f32.mrb[0].mxu0
        %v582 = vadd.f32 0.0, %v581
        %v583 = vpop.f32.mrb[0].mxu0
        %v584 = vpop.f32.mrb[0].mxu0
        %v585 = vpop.f32.mrb[0].mxu0
        %586 = vdwg.mxu0
        %v587 = vcvt.s32.f32 %v463
        %vm588 = vcmask 195584
        %v590 = vsel %vm588, 1065369472, 0
        %vm592 = vcmask 1043456
        %v593 = vsel %vm592, %v528, 0
        %595 = vmatprep.subr.bf16.mxu0 0
        %596 = vmatpush1.bf16.msra.mxu0 %v527
        %597 = vmatprep.subr.bf16.mxu0 0
        %598 = vmatpush1.bf16.msra.mxu0 %v593
        %599 = vmatprep.subr.bf16.mxu0 0
        %600 = vmatpush1.bf16.msra.mxu0 0
        %601 = vmatprep.subr.bf16.mxu0 0
        %602 = vmatpush1.bf16.msra.mxu0 0
        %603 = vmatprep.subr.bf16.mxu0 0
        %604 = vmatpush1.bf16.msra.mxu0 0
        %605 = vmatprep.subr.bf16.mxu0 0
        %606 = vmatpush1.bf16.msra.mxu0 0
        %607 = vmatprep.subr.bf16.mxu0 0
        %608 = vmatpush1.bf16.msra.mxu0 0
        %609 = vmatprep.subr.bf16.mxu0 0
        %610 = vmatpush1.bf16.msra.mxu0 0
        %611 = vmatprep.subr.bf16.mxu0 0
        %612 = vmatpush1.bf16.msra.mxu0 0
        %613 = vmatprep.subr.bf16.mxu0 0
        %614 = vmatpush1.bf16.msra.mxu0 0
        %615 = vmatprep.subr.bf16.mxu0 0
        %616 = vmatpush1.bf16.msra.mxu0 0
        %617 = vmatprep.subr.bf16.mxu0 0
        %618 = vmatpush1.bf16.msra.mxu0 0
        %619 = vmatprep.subr.bf16.mxu0 0
        %620 = vmatpush1.bf16.msra.mxu0 0
        %621 = vmatprep.subr.bf16.mxu0 0
        %622 = vmatpush1.bf16.msra.mxu0 0
        %623 = vmatprep.subr.bf16.mxu0 0
        %624 = vmatpush1.bf16.msra.mxu0 0
        %625 = vmatprep.subr.bf16.mxu0 0
        %626 = vmatpush1.bf16.msra.mxu0 0
        %627 = vmatprep.mubr.bf16.mxu0 0
        %628 = vmatmul.mubr.bf16.gmra.mrb[0].mxu0 %v590
        %v629 = vpop.f32.mrb[0].mxu0
        %v630 = vadd.f32 0.0, %v629
        %v631 = vpop.f32.mrb[0].mxu0
        %v632 = vpop.f32.mrb[0].mxu0
        %v633 = vpop.f32.mrb[0].mxu0
        %634 = vdwg.mxu0
        %v635 = vpack.c.bf16 %v577, %v574
        %v636 = vpack.c.bf16 %v582, %v582
        %v639 = vunpack.c.l.b16 %v635
        %v640 = vunpack.c.h.b16 %v635
        %v641 = vunpack.c.l.b16 %v636
        %v642 = vpack.c.b16 %v639, %v639
        %v643 = vpack.c.b16 %v640, %v640
        %v644 = vpack.c.b16 %v641, %v641
        %vm648 = vcmask 257024
        %649 = vst.msk [vmem:[%s254] sm:$0xf] %vm648, %v642
        %650 = vst.msk [vmem:[%s254 + $0x4] sm:$0xf] %vm648, %v643
        %651 = vst.msk [vmem:[%s254 + $0x8] sm:$0xf] %vm648, %v644
        %v652 = vsub.f32 %v574, %v321
        %v653 = vsub.f32 %v577, %v322
        %v654 = vsub.f32 %v582, %v323
        %v655 = vmul.f32 %v652, %v345
        %v656 = vmul.f32 %v653, %v346
        %v657 = vmul.f32 %v654, %v347
        %v658 = vmul.f32 %v655, %v655
        %v659 = vmul.f32 %v656, %v656
        %v660 = vmul.f32 %v657, %v657
        %v662 = vsel %vm329, 1.0, 0
        %v665 = vsel %vm329, %v658, 0
        %v668 = vsel %vm329, %v659, 0
        %v671 = vsel %vm329, %v660, 0
        %673 = vmatprep.subr.mxu0 0.0
        %674 = vmatpush1.xpose.msra.mxu0 %v665
        %675 = vmatprep.subr.mxu0 0.0
        %676 = vmatpush1.xpose.msra.mxu0 %v668
        %677 = vmatprep.subr.mxu0 0.0
        %678 = vmatpush1.xpose.msra.mxu0 %v671
        %679 = vmatprep.subr.mxu0 0.0
        %680 = vmatpush1.xpose.msra.mxu0 0.0
        %681 = vmatprep.subr.mxu0 0.0
        %682 = vmatpush1.xpose.msra.mxu0 0.0
        %683 = vmatprep.subr.mxu0 0.0
        %684 = vmatpush1.xpose.msra.mxu0 0.0
        %685 = vmatprep.subr.mxu0 0.0
        %686 = vmatpush1.xpose.msra.mxu0 0.0
        %687 = vmatprep.subr.mxu0 0.0
        %688 = vmatpush1.xpose.msra.mxu0 0.0
        %689 = vmatprep.subr.mxu0 0.0
        %690 = vmatpush1.xpose.msra.mxu0 0.0
        %691 = vmatprep.subr.mxu0 0.0
        %692 = vmatpush1.xpose.msra.mxu0 0.0
        %693 = vmatprep.subr.mxu0 0.0
        %694 = vmatpush1.xpose.msra.mxu0 0.0
        %695 = vmatprep.subr.mxu0 0.0
        %696 = vmatpush1.xpose.msra.mxu0 0.0
        %697 = vmatprep.subr.mxu0 0.0
        %698 = vmatpush1.xpose.msra.mxu0 0.0
        %699 = vmatprep.subr.mxu0 0.0
        %700 = vmatpush1.xpose.msra.mxu0 0.0
        %701 = vmatprep.subr.mxu0 0.0
        %702 = vmatpush1.xpose.msra.mxu0 0.0
        %703 = vmatprep.subr.mxu0 0.0
        %704 = vmatpush1.xpose.msra.mxu0 0.0
        %705 = vmatprep.subr.mxu0 0.0
        %706 = vmatpush1.xpose.msra.mxu0 0.0
        %707 = vmatprep.subr.mxu0 0.0
        %708 = vmatpush1.xpose.msra.mxu0 0.0
        %709 = vmatprep.subr.mxu0 0.0
        %710 = vmatpush1.xpose.msra.mxu0 0.0
        %711 = vmatprep.subr.mxu0 0.0
        %712 = vmatpush1.xpose.msra.mxu0 0.0
        %713 = vmatprep.subr.mxu0 0.0
        %714 = vmatpush1.xpose.msra.mxu0 0.0
        %715 = vmatprep.subr.mxu0 0.0
        %716 = vmatpush1.xpose.msra.mxu0 0.0
        %717 = vmatprep.subr.mxu0 0.0
        %718 = vmatpush1.xpose.msra.mxu0 0.0
        %719 = vmatprep.subr.mxu0 0.0
        %720 = vmatpush1.xpose.msra.mxu0 0.0
        %721 = vmatprep.subr.mxu0 0.0
        %722 = vmatpush1.xpose.msra.mxu0 0.0
        %723 = vmatprep.subr.mxu0 0.0
        %724 = vmatpush1.xpose.msra.mxu0 0.0
        %725 = vmatprep.subr.mxu0 0.0
        %726 = vmatpush1.xpose.msra.mxu0 0.0
        %727 = vmatprep.subr.mxu0 0.0
        %728 = vmatpush1.xpose.msra.mxu0 0.0
        %729 = vmatprep.subr.mxu0 0.0
        %730 = vmatpush1.xpose.msra.mxu0 0.0
        %731 = vmatprep.subr.mxu0 0.0
        %732 = vmatpush1.xpose.msra.mxu0 0.0
        %733 = vmatprep.subr.mxu0 0.0
        %734 = vmatpush1.xpose.msra.mxu0 0.0
        %735 = vmatprep.subr.mxu0 0.0
        %736 = vmatpush1.xpose.msra.mxu0 0.0
        %737 = vmatprep.mubr.f32.mxu0 0.0
        %738 = vmatmul.mubr.f32.gmra.mrb[0].mxu0 %v662
        %v739 = vpop.f32.mrb[0].mxu0
        %v740 = vadd.f32 0.0, %v739
        %v741 = vpop.f32.mrb[0].mxu0
        %742 = vdwg.mxu0
        %v744 = vsel %vm452, %v587, 0
        %v747 = vsel %vm452, %v524, 0
        %v750 = vsel %vm452, %v525, 0
        %v753 = vsel %vm452, %v526, 0
        %755 = vmatprep.subr.mxu0 0.0
        %v756 = vand.u32 %v747, 4294901760
        %757 = vmatpush1.xpose.msra.mxu0 %v756
        %758 = vmatprep.subr.mxu0 0.0
        %v759 = vand.u32 %v750, 4294901760
        %760 = vmatpush1.xpose.msra.mxu0 %v759
        %761 = vmatprep.subr.mxu0 0.0
        %v762 = vand.u32 %v753, 4294901760
        %763 = vmatpush1.xpose.msra.mxu0 %v762
        %764 = vmatprep.subr.mxu0 0.0
        %765 = vmatpush1.xpose.msra.mxu0 0.0
        %766 = vmatprep.subr.mxu0 0.0
        %767 = vmatpush1.xpose.msra.mxu0 0.0
        %768 = vmatprep.subr.mxu0 0.0
        %769 = vmatpush1.xpose.msra.mxu0 0.0
        %770 = vmatprep.subr.mxu0 0.0
        %771 = vmatpush1.xpose.msra.mxu0 0.0
        %772 = vmatprep.subr.mxu0 0.0
        %773 = vmatpush1.xpose.msra.mxu0 0.0
        %774 = vmatprep.subr.mxu0 0.0
        %775 = vmatpush1.xpose.msra.mxu0 0.0
        %776 = vmatprep.subr.mxu0 0.0
        %777 = vmatpush1.xpose.msra.mxu0 0.0
        %778 = vmatprep.subr.mxu0 0.0
        %779 = vmatpush1.xpose.msra.mxu0 0.0
        %780 = vmatprep.subr.mxu0 0.0
        %781 = vmatpush1.xpose.msra.mxu0 0.0
        %782 = vmatprep.subr.mxu0 0.0
        %783 = vmatpush1.xpose.msra.mxu0 0.0
        %784 = vmatprep.subr.mxu0 0.0
        %785 = vmatpush1.xpose.msra.mxu0 0.0
        %786 = vmatprep.subr.mxu0 0.0
        %787 = vmatpush1.xpose.msra.mxu0 0.0
        %788 = vmatprep.subr.mxu0 0.0
        %789 = vmatpush1.xpose.msra.mxu0 0.0
        %790 = vmatprep.subr.mxu0 0.0
        %791 = vmatpush1.xpose.msra.mxu0 0.0
        %792 = vmatprep.subr.mxu0 0.0
        %793 = vmatpush1.xpose.msra.mxu0 0.0
        %794 = vmatprep.subr.mxu0 0.0
        %795 = vmatpush1.xpose.msra.mxu0 0.0
        %796 = vmatprep.subr.mxu0 0.0
        %797 = vmatpush1.xpose.msra.mxu0 0.0
        %798 = vmatprep.subr.mxu0 0.0
        %799 = vmatpush1.xpose.msra.mxu0 0.0
        %800 = vmatprep.subr.mxu0 0.0
        %801 = vmatpush1.xpose.msra.mxu0 0.0
        %802 = vmatprep.subr.mxu0 0.0
        %803 = vmatpush1.xpose.msra.mxu0 0.0
        %804 = vmatprep.subr.mxu0 0.0
        %805 = vmatpush1.xpose.msra.mxu0 0.0
        %806 = vmatprep.subr.mxu0 0.0
        %807 = vmatpush1.xpose.msra.mxu0 0.0
        %808 = vmatprep.subr.mxu0 0.0
        %809 = vmatpush1.xpose.msra.mxu0 0.0
        %810 = vmatprep.subr.mxu0 0.0
        %811 = vmatpush1.xpose.msra.mxu0 0.0
        %812 = vmatprep.subr.mxu0 0.0
        %813 = vmatpush1.xpose.msra.mxu0 0.0
        %814 = vmatprep.subr.mxu0 0.0
        %815 = vmatpush1.xpose.msra.mxu0 0.0
        %816 = vmatprep.subr.mxu0 0.0
        %817 = vmatpush1.xpose.msra.mxu0 0.0
        %818 = vmatprep.subr.mxu0 0.0
        %819 = vmatpush1.xpose.msra.mxu0 0.0
        %820 = vmatprep.subr.mxu0 0.0
        %821 = vmatpush1.xpose.msra.mxu0 0.0
        %822 = vmatprep.mubr.f32.mxu0 0.0
        %v823 = vand.u32 %v744, 4294901760
        %v824 = vsub.f32 %v744, %v823
        %v825 = vand.u32 %v824, 4294901760
        %v826 = vsub.f32 %v824, %v825
        %v827 = vand.u32 %v826, 4294901760
        %828 = vmatmul.mubr.f32.gmra.mrb[0].mxu0 %v827
        %v829 = vpop.f32.mrb[0].mxu0
        %v830 = vadd.f32 0.5, %v829
        %v831 = vpop.f32.mrb[0].mxu0
        %832 = vdwg.mxu0
        %833 = vmatprep.subr.mxu0 0.0
        %v834 = vand.u32 %v747, 4294901760
        %v835 = vsub.f32 %v747, %v834
        %v836 = vand.u32 %v835, 4294901760
        %v837 = vsub.f32 %v835, %v836
        %v838 = vand.u32 %v837, 4294901760
        %839 = vmatpush1.xpose.msra.mxu0 %v838
        %840 = vmatprep.subr.mxu0 0.0
        %v841 = vand.u32 %v750, 4294901760
        %v842 = vsub.f32 %v750, %v841
        %v843 = vand.u32 %v842, 4294901760
        %v844 = vsub.f32 %v842, %v843
        %v845 = vand.u32 %v844, 4294901760
        %846 = vmatpush1.xpose.msra.mxu0 %v845
        %847 = vmatprep.subr.mxu0 0.0
        %v848 = vand.u32 %v753, 4294901760
        %v849 = vsub.f32 %v753, %v848
        %v850 = vand.u32 %v849, 4294901760
        %v851 = vsub.f32 %v849, %v850
        %v852 = vand.u32 %v851, 4294901760
        %853 = vmatpush1.xpose.msra.mxu0 %v852
        %854 = vmatprep.subr.mxu0 0.0
        %855 = vmatpush1.xpose.msra.mxu0 0.0
        %856 = vmatprep.subr.mxu0 0.0
        %857 = vmatpush1.xpose.msra.mxu0 0.0
        %858 = vmatprep.subr.mxu0 0.0
        %859 = vmatpush1.xpose.msra.mxu0 0.0
        %860 = vmatprep.subr.mxu0 0.0
        %861 = vmatpush1.xpose.msra.mxu0 0.0
        %862 = vmatprep.subr.mxu0 0.0
        %863 = vmatpush1.xpose.msra.mxu0 0.0
        %864 = vmatprep.subr.mxu0 0.0
        %865 = vmatpush1.xpose.msra.mxu0 0.0
        %866 = vmatprep.subr.mxu0 0.0
        %867 = vmatpush1.xpose.msra.mxu0 0.0
        %868 = vmatprep.subr.mxu0 0.0
        %869 = vmatpush1.xpose.msra.mxu0 0.0
        %870 = vmatprep.subr.mxu0 0.0
        %871 = vmatpush1.xpose.msra.mxu0 0.0
        %872 = vmatprep.subr.mxu0 0.0
        %873 = vmatpush1.xpose.msra.mxu0 0.0
        %874 = vmatprep.subr.mxu0 0.0
        %875 = vmatpush1.xpose.msra.mxu0 0.0
        %876 = vmatprep.subr.mxu0 0.0
        %877 = vmatpush1.xpose.msra.mxu0 0.0
        %878 = vmatprep.subr.mxu0 0.0
        %879 = vmatpush1.xpose.msra.mxu0 0.0
        %880 = vmatprep.subr.mxu0 0.0
        %881 = vmatpush1.xpose.msra.mxu0 0.0
        %882 = vmatprep.subr.mxu0 0.0
        %883 = vmatpush1.xpose.msra.mxu0 0.0
        %884 = vmatprep.subr.mxu0 0.0
        %885 = vmatpush1.xpose.msra.mxu0 0.0
        %886 = vmatprep.subr.mxu0 0.0
        %887 = vmatpush1.xpose.msra.mxu0 0.0
        %888 = vmatprep.subr.mxu0 0.0
        %889 = vmatpush1.xpose.msra.mxu0 0.0
        %890 = vmatprep.subr.mxu0 0.0
        %891 = vmatpush1.xpose.msra.mxu0 0.0
        %892 = vmatprep.subr.mxu0 0.0
        %893 = vmatpush1.xpose.msra.mxu0 0.0
        %894 = vmatprep.subr.mxu0 0.0
        %895 = vmatpush1.xpose.msra.mxu0 0.0
        %896 = vmatprep.subr.mxu0 0.0
        %897 = vmatpush1.xpose.msra.mxu0 0.0
        %898 = vmatprep.subr.mxu0 0.0
        %899 = vmatpush1.xpose.msra.mxu0 0.0
        %900 = vmatprep.subr.mxu0 0.0
        %901 = vmatpush1.xpose.msra.mxu0 0.0
        %902 = vmatprep.subr.mxu0 0.0
        %903 = vmatpush1.xpose.msra.mxu0 0.0
        %904 = vmatprep.subr.mxu0 0.0
        %905 = vmatpush1.xpose.msra.mxu0 0.0
        %906 = vmatprep.subr.mxu0 0.0
        %907 = vmatpush1.xpose.msra.mxu0 0.0
        %908 = vmatprep.subr.mxu0 0.0
        %909 = vmatpush1.xpose.msra.mxu0 0.0
        %910 = vmatprep.subr.mxu0 0.0
        %911 = vmatpush1.xpose.msra.mxu0 0.0
        %912 = vmatprep.mubr.f32.mxu0 0.0
        %v913 = vand.u32 %v744, 4294901760
        %914 = vmatmul.mubr.f32.gmra.mrb[0].mxu0 %v913
        %v915 = vpop.f32.mrb[0].mxu0
        %v916 = vadd.f32 %v830, %v915
        %v917 = vpop.f32.mrb[0].mxu0
        %918 = vdwg.mxu0
        %919 = vmatprep.subr.mxu0 0.0
        %v920 = vand.u32 %v747, 4294901760
        %v921 = vsub.f32 %v747, %v920
        %922 = vmatpush1.xpose.msra.mxu0 %v921
        %923 = vmatprep.subr.mxu0 0.0
        %v924 = vand.u32 %v750, 4294901760
        %v925 = vsub.f32 %v750, %v924
        %926 = vmatpush1.xpose.msra.mxu0 %v925
        %927 = vmatprep.subr.mxu0 0.0
        %v928 = vand.u32 %v753, 4294901760
        %v929 = vsub.f32 %v753, %v928
        %930 = vmatpush1.xpose.msra.mxu0 %v929
        %931 = vmatprep.subr.mxu0 0.0
        %932 = vmatpush1.xpose.msra.mxu0 0.0
        %933 = vmatprep.subr.mxu0 0.0
        %934 = vmatpush1.xpose.msra.mxu0 0.0
        %935 = vmatprep.subr.mxu0 0.0
        %936 = vmatpush1.xpose.msra.mxu0 0.0
        %937 = vmatprep.subr.mxu0 0.0
        %938 = vmatpush1.xpose.msra.mxu0 0.0
        %939 = vmatprep.subr.mxu0 0.0
        %940 = vmatpush1.xpose.msra.mxu0 0.0
        %941 = vmatprep.subr.mxu0 0.0
        %942 = vmatpush1.xpose.msra.mxu0 0.0
        %943 = vmatprep.subr.mxu0 0.0
        %944 = vmatpush1.xpose.msra.mxu0 0.0
        %945 = vmatprep.subr.mxu0 0.0
        %946 = vmatpush1.xpose.msra.mxu0 0.0
        %947 = vmatprep.subr.mxu0 0.0
        %948 = vmatpush1.xpose.msra.mxu0 0.0
        %949 = vmatprep.subr.mxu0 0.0
        %950 = vmatpush1.xpose.msra.mxu0 0.0
        %951 = vmatprep.subr.mxu0 0.0
        %952 = vmatpush1.xpose.msra.mxu0 0.0
        %953 = vmatprep.subr.mxu0 0.0
        %954 = vmatpush1.xpose.msra.mxu0 0.0
        %955 = vmatprep.subr.mxu0 0.0
        %956 = vmatpush1.xpose.msra.mxu0 0.0
        %957 = vmatprep.subr.mxu0 0.0
        %958 = vmatpush1.xpose.msra.mxu0 0.0
        %959 = vmatprep.subr.mxu0 0.0
        %960 = vmatpush1.xpose.msra.mxu0 0.0
        %961 = vmatprep.subr.mxu0 0.0
        %962 = vmatpush1.xpose.msra.mxu0 0.0
        %963 = vmatprep.subr.mxu0 0.0
        %964 = vmatpush1.xpose.msra.mxu0 0.0
        %965 = vmatprep.subr.mxu0 0.0
        %966 = vmatpush1.xpose.msra.mxu0 0.0
        %967 = vmatprep.subr.mxu0 0.0
        %968 = vmatpush1.xpose.msra.mxu0 0.0
        %969 = vmatprep.subr.mxu0 0.0
        %970 = vmatpush1.xpose.msra.mxu0 0.0
        %971 = vmatprep.subr.mxu0 0.0
        %972 = vmatpush1.xpose.msra.mxu0 0.0
        %973 = vmatprep.subr.mxu0 0.0
        %974 = vmatpush1.xpose.msra.mxu0 0.0
        %975 = vmatprep.subr.mxu0 0.0
        %976 = vmatpush1.xpose.msra.mxu0 0.0
        %977 = vmatprep.subr.mxu0 0.0
        %978 = vmatpush1.xpose.msra.mxu0 0.0
        %979 = vmatprep.subr.mxu0 0.0
        %980 = vmatpush1.xpose.msra.mxu0 0.0
        %981 = vmatprep.subr.mxu0 0.0
        %982 = vmatpush1.xpose.msra.mxu0 0.0
        %983 = vmatprep.subr.mxu0 0.0
        %984 = vmatpush1.xpose.msra.mxu0 0.0
        %985 = vmatprep.subr.mxu0 0.0
        %986 = vmatpush1.xpose.msra.mxu0 0.0
        %987 = vmatprep.subr.mxu0 0.0
        %988 = vmatpush1.xpose.msra.mxu0 0.0
        %989 = vmatprep.mubr.f32.mxu0 0.0
        %v990 = vand.u32 %v744, 4294901760
        %v991 = vsub.f32 %v744, %v990
        %992 = vmatmul.mubr.f32.gmra.mrb[0].mxu0 %v991
        %v993 = vpop.f32.mrb[0].mxu0
        %v994 = vadd.f32 %v916, %v993
        %v995 = vpop.f32.mrb[0].mxu0
        %996 = vdwg.mxu0
        %997 = vmatprep.subr.mxu0 0.0
        %v998 = vand.u32 %v747, 4294901760
        %999 = vmatpush1.xpose.msra.mxu0 %v998
        %1000 = vmatprep.subr.mxu0 0.0
        %v1001 = vand.u32 %v750, 4294901760
        %1002 = vmatpush1.xpose.msra.mxu0 %v1001
        %1003 = vmatprep.subr.mxu0 0.0
        %v1004 = vand.u32 %v753, 4294901760
        %1005 = vmatpush1.xpose.msra.mxu0 %v1004
        %1006 = vmatprep.subr.mxu0 0.0
        %1007 = vmatpush1.xpose.msra.mxu0 0.0
        %1008 = vmatprep.subr.mxu0 0.0
        %1009 = vmatpush1.xpose.msra.mxu0 0.0
        %1010 = vmatprep.subr.mxu0 0.0
        %1011 = vmatpush1.xpose.msra.mxu0 0.0
        %1012 = vmatprep.subr.mxu0 0.0
        %1013 = vmatpush1.xpose.msra.mxu0 0.0
        %1014 = vmatprep.subr.mxu0 0.0
        %1015 = vmatpush1.xpose.msra.mxu0 0.0
        %1016 = vmatprep.subr.mxu0 0.0
        %1017 = vmatpush1.xpose.msra.mxu0 0.0
        %1018 = vmatprep.subr.mxu0 0.0
        %1019 = vmatpush1.xpose.msra.mxu0 0.0
        %1020 = vmatprep.subr.mxu0 0.0
        %1021 = vmatpush1.xpose.msra.mxu0 0.0
        %1022 = vmatprep.subr.mxu0 0.0
        %1023 = vmatpush1.xpose.msra.mxu0 0.0
        %1024 = vmatprep.subr.mxu0 0.0
        %1025 = vmatpush1.xpose.msra.mxu0 0.0
        %1026 = vmatprep.subr.mxu0 0.0
        %1027 = vmatpush1.xpose.msra.mxu0 0.0
        %1028 = vmatprep.subr.mxu0 0.0
        %1029 = vmatpush1.xpose.msra.mxu0 0.0
        %1030 = vmatprep.subr.mxu0 0.0
        %1031 = vmatpush1.xpose.msra.mxu0 0.0
        %1032 = vmatprep.subr.mxu0 0.0
        %1033 = vmatpush1.xpose.msra.mxu0 0.0
        %1034 = vmatprep.subr.mxu0 0.0
        %1035 = vmatpush1.xpose.msra.mxu0 0.0
        %1036 = vmatprep.subr.mxu0 0.0
        %1037 = vmatpush1.xpose.msra.mxu0 0.0
        %1038 = vmatprep.subr.mxu0 0.0
        %1039 = vmatpush1.xpose.msra.mxu0 0.0
        %1040 = vmatprep.subr.mxu0 0.0
        %1041 = vmatpush1.xpose.msra.mxu0 0.0
        %1042 = vmatprep.subr.mxu0 0.0
        %1043 = vmatpush1.xpose.msra.mxu0 0.0
        %1044 = vmatprep.subr.mxu0 0.0
        %1045 = vmatpush1.xpose.msra.mxu0 0.0
        %1046 = vmatprep.subr.mxu0 0.0
        %1047 = vmatpush1.xpose.msra.mxu0 0.0
        %1048 = vmatprep.subr.mxu0 0.0
        %1049 = vmatpush1.xpose.msra.mxu0 0.0
        %1050 = vmatprep.subr.mxu0 0.0
        %1051 = vmatpush1.xpose.msra.mxu0 0.0
        %1052 = vmatprep.subr.mxu0 0.0
        %1053 = vmatpush1.xpose.msra.mxu0 0.0
        %1054 = vmatprep.subr.mxu0 0.0
        %1055 = vmatpush1.xpose.msra.mxu0 0.0
        %1056 = vmatprep.subr.mxu0 0.0
        %1057 = vmatpush1.xpose.msra.mxu0 0.0
        %1058 = vmatprep.subr.mxu0 0.0
        %1059 = vmatpush1.xpose.msra.mxu0 0.0
        %1060 = vmatprep.subr.mxu0 0.0
        %1061 = vmatpush1.xpose.msra.mxu0 0.0
        %1062 = vmatprep.subr.mxu0 0.0
        %1063 = vmatpush1.xpose.msra.mxu0 0.0
        %1064 = vmatprep.mubr.f32.mxu0 0.0
        %v1065 = vand.u32 %v744, 4294901760
        %v1066 = vsub.f32 %v744, %v1065
        %v1067 = vand.u32 %v1066, 4294901760
        %1068 = vmatmul.mubr.f32.gmra.mrb[0].mxu0 %v1067
        %v1069 = vpop.f32.mrb[0].mxu0
        %v1070 = vadd.f32 %v994, %v1069
        %v1071 = vpop.f32.mrb[0].mxu0
        %1072 = vdwg.mxu0
        %1073 = vmatprep.subr.mxu0 0.0
        %v1074 = vand.u32 %v747, 4294901760
        %v1075 = vsub.f32 %v747, %v1074
        %v1076 = vand.u32 %v1075, 4294901760
        %1077 = vmatpush1.xpose.msra.mxu0 %v1076
        %1078 = vmatprep.subr.mxu0 0.0
        %v1079 = vand.u32 %v750, 4294901760
        %v1080 = vsub.f32 %v750, %v1079
        %v1081 = vand.u32 %v1080, 4294901760
        %1082 = vmatpush1.xpose.msra.mxu0 %v1081
        %1083 = vmatprep.subr.mxu0 0.0
        %v1084 = vand.u32 %v753, 4294901760
        %v1085 = vsub.f32 %v753, %v1084
        %v1086 = vand.u32 %v1085, 4294901760
        %1087 = vmatpush1.xpose.msra.mxu0 %v1086
        %1088 = vmatprep.subr.mxu0 0.0
        %1089 = vmatpush1.xpose.msra.mxu0 0.0
        %1090 = vmatprep.subr.mxu0 0.0
        %1091 = vmatpush1.xpose.msra.mxu0 0.0
        %1092 = vmatprep.subr.mxu0 0.0
        %1093 = vmatpush1.xpose.msra.mxu0 0.0
        %1094 = vmatprep.subr.mxu0 0.0
        %1095 = vmatpush1.xpose.msra.mxu0 0.0
        %1096 = vmatprep.subr.mxu0 0.0
        %1097 = vmatpush1.xpose.msra.mxu0 0.0
        %1098 = vmatprep.subr.mxu0 0.0
        %1099 = vmatpush1.xpose.msra.mxu0 0.0
        %1100 = vmatprep.subr.mxu0 0.0
        %1101 = vmatpush1.xpose.msra.mxu0 0.0
        %1102 = vmatprep.subr.mxu0 0.0
        %1103 = vmatpush1.xpose.msra.mxu0 0.0
        %1104 = vmatprep.subr.mxu0 0.0
        %1105 = vmatpush1.xpose.msra.mxu0 0.0
        %1106 = vmatprep.subr.mxu0 0.0
        %1107 = vmatpush1.xpose.msra.mxu0 0.0
        %1108 = vmatprep.subr.mxu0 0.0
        %1109 = vmatpush1.xpose.msra.mxu0 0.0
        %1110 = vmatprep.subr.mxu0 0.0
        %1111 = vmatpush1.xpose.msra.mxu0 0.0
        %1112 = vmatprep.subr.mxu0 0.0
        %1113 = vmatpush1.xpose.msra.mxu0 0.0
        %1114 = vmatprep.subr.mxu0 0.0
        %1115 = vmatpush1.xpose.msra.mxu0 0.0
        %1116 = vmatprep.subr.mxu0 0.0
        %1117 = vmatpush1.xpose.msra.mxu0 0.0
        %1118 = vmatprep.subr.mxu0 0.0
        %1119 = vmatpush1.xpose.msra.mxu0 0.0
        %1120 = vmatprep.subr.mxu0 0.0
        %1121 = vmatpush1.xpose.msra.mxu0 0.0
        %1122 = vmatprep.subr.mxu0 0.0
        %1123 = vmatpush1.xpose.msra.mxu0 0.0
        %1124 = vmatprep.subr.mxu0 0.0
        %1125 = vmatpush1.xpose.msra.mxu0 0.0
        %1126 = vmatprep.subr.mxu0 0.0
        %1127 = vmatpush1.xpose.msra.mxu0 0.0
        %1128 = vmatprep.subr.mxu0 0.0
        %1129 = vmatpush1.xpose.msra.mxu0 0.0
        %1130 = vmatprep.subr.mxu0 0.0
        %1131 = vmatpush1.xpose.msra.mxu0 0.0
        %1132 = vmatprep.subr.mxu0 0.0
        %1133 = vmatpush1.xpose.msra.mxu0 0.0
        %1134 = vmatprep.subr.mxu0 0.0
        %1135 = vmatpush1.xpose.msra.mxu0 0.0
        %1136 = vmatprep.subr.mxu0 0.0
        %1137 = vmatpush1.xpose.msra.mxu0 0.0
        %1138 = vmatprep.subr.mxu0 0.0
        %1139 = vmatpush1.xpose.msra.mxu0 0.0
        %1140 = vmatprep.subr.mxu0 0.0
        %1141 = vmatpush1.xpose.msra.mxu0 0.0
        %1142 = vmatprep.subr.mxu0 0.0
        %1143 = vmatpush1.xpose.msra.mxu0 0.0
        %1144 = vmatprep.subr.mxu0 0.0
        %1145 = vmatpush1.xpose.msra.mxu0 0.0
        %1146 = vmatprep.mubr.f32.mxu0 0.0
        %v1147 = vand.u32 %v744, 4294901760
        %1148 = vmatmul.mubr.f32.gmra.mrb[0].mxu0 %v1147
        %v1149 = vpop.f32.mrb[0].mxu0
        %v1150 = vadd.f32 %v1070, %v1149
        %v1151 = vpop.f32.mrb[0].mxu0
        %1152 = vdwg.mxu0
        %1153 = vmatprep.subr.mxu0 0.0
        %v1154 = vand.u32 %v747, 4294901760
        %1155 = vmatpush1.xpose.msra.mxu0 %v1154
        %1156 = vmatprep.subr.mxu0 0.0
        %v1157 = vand.u32 %v750, 4294901760
        %1158 = vmatpush1.xpose.msra.mxu0 %v1157
        %1159 = vmatprep.subr.mxu0 0.0
        %v1160 = vand.u32 %v753, 4294901760
        %1161 = vmatpush1.xpose.msra.mxu0 %v1160
        %1162 = vmatprep.subr.mxu0 0.0
        %1163 = vmatpush1.xpose.msra.mxu0 0.0
        %1164 = vmatprep.subr.mxu0 0.0
        %1165 = vmatpush1.xpose.msra.mxu0 0.0
        %1166 = vmatprep.subr.mxu0 0.0
        %1167 = vmatpush1.xpose.msra.mxu0 0.0
        %1168 = vmatprep.subr.mxu0 0.0
        %1169 = vmatpush1.xpose.msra.mxu0 0.0
        %1170 = vmatprep.subr.mxu0 0.0
        %1171 = vmatpush1.xpose.msra.mxu0 0.0
        %1172 = vmatprep.subr.mxu0 0.0
        %1173 = vmatpush1.xpose.msra.mxu0 0.0
        %1174 = vmatprep.subr.mxu0 0.0
        %1175 = vmatpush1.xpose.msra.mxu0 0.0
        %1176 = vmatprep.subr.mxu0 0.0
        %1177 = vmatpush1.xpose.msra.mxu0 0.0
        %1178 = vmatprep.subr.mxu0 0.0
        %1179 = vmatpush1.xpose.msra.mxu0 0.0
        %1180 = vmatprep.subr.mxu0 0.0
        %1181 = vmatpush1.xpose.msra.mxu0 0.0
        %1182 = vmatprep.subr.mxu0 0.0
        %1183 = vmatpush1.xpose.msra.mxu0 0.0
        %1184 = vmatprep.subr.mxu0 0.0
        %1185 = vmatpush1.xpose.msra.mxu0 0.0
        %1186 = vmatprep.subr.mxu0 0.0
        %1187 = vmatpush1.xpose.msra.mxu0 0.0
        %1188 = vmatprep.subr.mxu0 0.0
        %1189 = vmatpush1.xpose.msra.mxu0 0.0
        %1190 = vmatprep.subr.mxu0 0.0
        %1191 = vmatpush1.xpose.msra.mxu0 0.0
        %1192 = vmatprep.subr.mxu0 0.0
        %1193 = vmatpush1.xpose.msra.mxu0 0.0
        %1194 = vmatprep.subr.mxu0 0.0
        %1195 = vmatpush1.xpose.msra.mxu0 0.0
        %1196 = vmatprep.subr.mxu0 0.0
        %1197 = vmatpush1.xpose.msra.mxu0 0.0
        %1198 = vmatprep.subr.mxu0 0.0
        %1199 = vmatpush1.xpose.msra.mxu0 0.0
        %1200 = vmatprep.subr.mxu0 0.0
        %1201 = vmatpush1.xpose.msra.mxu0 0.0
        %1202 = vmatprep.subr.mxu0 0.0
        %1203 = vmatpush1.xpose.msra.mxu0 0.0
        %1204 = vmatprep.subr.mxu0 0.0
        %1205 = vmatpush1.xpose.msra.mxu0 0.0
        %1206 = vmatprep.subr.mxu0 0.0
        %1207 = vmatpush1.xpose.msra.mxu0 0.0
        %1208 = vmatprep.subr.mxu0 0.0
        %1209 = vmatpush1.xpose.msra.mxu0 0.0
        %1210 = vmatprep.subr.mxu0 0.0
        %1211 = vmatpush1.xpose.msra.mxu0 0.0
        %1212 = vmatprep.subr.mxu0 0.0
        %1213 = vmatpush1.xpose.msra.mxu0 0.0
        %1214 = vmatprep.subr.mxu0 0.0
        %1215 = vmatpush1.xpose.msra.mxu0 0.0
        %1216 = vmatprep.subr.mxu0 0.0
        %1217 = vmatpush1.xpose.msra.mxu0 0.0
        %1218 = vmatprep.subr.mxu0 0.0
        %1219 = vmatpush1.xpose.msra.mxu0 0.0
        %1220 = vmatprep.mubr.f32.mxu0 0.0
        %v1221 = vand.u32 %v744, 4294901760
        %1222 = vmatmul.mubr.f32.gmra.mrb[0].mxu0 %v1221
        %v1223 = vpop.f32.mrb[0].mxu0
        %v1224 = vadd.f32 %v1150, %v1223
        %v1225 = vpop.f32.mrb[0].mxu0
        %1226 = vdwg.mxu0
        %v1227 = vcvt.f32.s32.to.zero.pseudo %v1224
        %vm1228 = vcmask 188416
        %1229 = vst.msk [vmem:[%s291] sm:$0x1] %vm1228, %v1227
        %1230 = vst.msk [vmem:[%s294] sm:$0x1] %vm1228, %v740
        %vm1231 = vcmask 516096
        %1232 = vst.msk [vmem:[%s297] sm:$0x1] %vm1231, %v630
        %s1233 = sand.u32 %s94, 1
        %s1234 = sand.u32 %s94, 1
        %s1235 = smul.addr %s1234, 12
        %s1236 = scalar_lea.vmem [#allocation2], %s1235
        %p1237 = scmp.lt.s32.totalorder %s18, 1
        %s1238 = scalar_select %p1237, %s18, 1
        %s1239 = scalar_lea.vmem %s4, %s1238
        %p1240 = scmp.lt.s32.totalorder %s18, 1
        %s1241 = scalar_select %p1240, %s18, 1
        %s1242 = scalar_lea.vmem %s5, %s1241
        %p1243 = scmp.lt.s32.totalorder %s18, 1
        %s1244 = scalar_select %p1243, %s18, 1
        %s1245 = scalar_lea.vmem %s6, %s1244
        // Predicated region
        $region33: #{vector_quantizer_forward.1} parent=31 // pred_check
          %p1246 = pneg %p104
        $region34: #{vector_quantizer_forward.1} parent=31 // pred_check_branch
          %1248 = sbr.rel (%p1246) target = $region36
        $region35: #{vector_quantizer_forward.1} parent=31 // pred_region
          %s1249 = smul.u32 3, %s18
          %s1250 = ssub.s32 5, %s1249
          %p1251 = scmp.lt.s32.totalorder %s1250, 3
          %s1252 = scalar_select %p1251, %s1250, 3
          %s1253 = smul.u32 64, %s1252
          %p1254 = scmp.ne.s32.totalorder 0, %s1253
          %s1255 = smul.addr %s1249, 4
          %s1256 = scalar_lea.vmem %s3, %s1255
          // Predicated region
          $region37: #{vector_quantizer_forward.1} parent=35 // pred_check
            %p1257 = pneg %p1254
          $region38: #{vector_quantizer_forward.1} parent=35 // pred_check_branch
            %1259 = sbr.rel (%p1257) target = $region40
          $region39: #{vector_quantizer_forward.1} parent=35 // pred_region
            // Predicated region
            $region41: #{vector_quantizer_forward.1} parent=39 // pred_check
              _
            $region42: #{vector_quantizer_forward.1} parent=39 // pred_check_branch
              %1261 = sbr.rel target = $region44
            $region43: #{vector_quantizer_forward.1} parent=39 // pred_region
              // Predicated region
              $region63: #{vector_quantizer_forward.1} parent=43 // pred_check
                _
              $region64: #{vector_quantizer_forward.1} parent=43 // pred_check_branch
                %1315 = sbr.rel (0) target = $region66
              $region65: #{vector_quantizer_forward.1} parent=43 // pred_region
                %s1317 = sdiv.u32.pop %s1252, 3
                %s1318 = srem.u32.pop %s1252, 3
                // While loop
                $region67: #{vector_quantizer_forward.1} parent=65 // loop_pre_header
                  _
                $region68: #{vector_quantizer_forward.1} parent=65 // loop_header
                  %s1320 = sphi 0, %s1322
                  %p1321 = scmp.ge.s32.totalorder %s1320, %s1317
                  %s1325 = sphi 0, %s1336
                  %s1326 = sphi %s1236, %s1339
                  %s1327 = sphi %s1256, %s1340
                $region69: #{vector_quantizer_forward.1} parent=65 // loop_header_branch
                  %1324 = sbr.rel (%p1321) target = $region73
                $region70: #{vector_quantizer_forward.1} parent=65 // loop_body
                  %v1328 = vld [vmem:[%s1326] sm:$0xf]
                  %1329 = vst [vmem:[%s1327] sm:$0xf] %v1328
                  %v1330 = vld [vmem:[%s1326 + $0x4] sm:$0xf]
                  %1331 = vst [vmem:[%s1327 + $0x4] sm:$0xf] %v1330
                  %v1332 = vld [vmem:[%s1326 + $0x8] sm:$0xf]
                  %1333 = vst [vmem:[%s1327 + $0x8] sm:$0xf] %v1332
                  %s1334 = sadd.s32 1, %s1325
                  %p1335 = scmp.ge.s32.totalorder %s1334, %s1317
                  %s1336 = scalar_select %p1335, 0, %s1334
                  %s1337 = smul.u32 %s1336, 12
                  %s1338 = smul.u32 %s1336, 12
                  %s1339 = scalar_lea.vmem %s1236, %s1337 [#allocation2]
                  %s1340 = scalar_lea.vmem %s1256, %s1338
                $region71: #{vector_quantizer_forward.1} parent=65 // loop_footer
                  %s1322 = sadd.s32 %s1320, 1
                $region72: #{vector_quantizer_forward.1} parent=65 // loop_footer_branch
                  %1319 = sbr.rel target = $region68
                $region73: #{vector_quantizer_forward.1} parent=65 // loop_exit
                  _
                %s1341 = sdiv.u32.pop %s1252, 3
                %s1342 = srem.u32.pop %s1252, 3
                %s1343 = smul.u32 %s1341, 3
                %s1344 = smul.u32 4, %s1343
                %s1345 = scalar_lea.vmem %s1236, %s1344 [#allocation2]
                %s1346 = smul.u32 4, %s1343
                %s1347 = scalar_lea.vmem %s1256, %s1346
                // While loop
                $region74: #{vector_quantizer_forward.1} parent=65 // loop_pre_header
                  _
                $region75: #{vector_quantizer_forward.1} parent=65 // loop_header
                  %s1349 = sphi 0, %s1351
                  %p1350 = scmp.ge.s32.totalorder %s1349, %s1342
                  %s1354 = sphi 0, %s1361
                  %s1355 = sphi %s1345, %s1364
                  %s1356 = sphi %s1347, %s1365
                $region76: #{vector_quantizer_forward.1} parent=65 // loop_header_branch
                  %1353 = sbr.rel (%p1350) target = $region80
                $region77: #{vector_quantizer_forward.1} parent=65 // loop_body
                  %v1357 = vld [vmem:[%s1355] sm:$0xf]
                  %1358 = vst [vmem:[%s1356] sm:$0xf] %v1357
                  %s1359 = sadd.s32 1, %s1354
                  %p1360 = scmp.ge.s32.totalorder %s1359, %s1342
                  %s1361 = scalar_select %p1360, 0, %s1359
                  %s1362 = smul.u32 %s1361, 4
                  %s1363 = smul.u32 %s1361, 4
                  %s1364 = scalar_lea.vmem %s1345, %s1362 [#allocation2]
                  %s1365 = scalar_lea.vmem %s1347, %s1363
                $region78: #{vector_quantizer_forward.1} parent=65 // loop_footer
                  %s1351 = sadd.s32 %s1349, 1
                $region79: #{vector_quantizer_forward.1} parent=65 // loop_footer_branch
                  %1348 = sbr.rel target = $region75
                $region80: #{vector_quantizer_forward.1} parent=65 // loop_exit
                  _
              $region66: #{vector_quantizer_forward.1} parent=43 // pred_fallthru
                _
            $region44: #{vector_quantizer_forward.1} parent=39 // pred_fallthru
              _
            // Predicated region
            $region45: #{vector_quantizer_forward.1} parent=39 // pred_check
              _
            $region46: #{vector_quantizer_forward.1} parent=39 // pred_check_branch
              %1263 = sbr.rel (0) target = $region48
            $region47: #{vector_quantizer_forward.1} parent=39 // pred_region
              %s1265 = sdiv.u32.pop %s1252, 3
              %s1266 = srem.u32.pop %s1252, 3
              // While loop
              $region49: #{vector_quantizer_forward.1} parent=47 // loop_pre_header
                _
              $region50: #{vector_quantizer_forward.1} parent=47 // loop_header
                %s1268 = sphi 0, %s1270
                %p1269 = scmp.ge.s32.totalorder %s1268, %s1265
                %s1273 = sphi 0, %s1284
                %s1274 = sphi %s1236, %s1287
                %s1275 = sphi %s1256, %s1288
              $region51: #{vector_quantizer_forward.1} parent=47 // loop_header_branch
                %1272 = sbr.rel (%p1269) target = $region55
              $region52: #{vector_quantizer_forward.1} parent=47 // loop_body
                %v1276 = vld [vmem:[%s1274] sm:$0xf]
                %1277 = vst [vmem:[%s1275] sm:$0xf] %v1276
                %v1278 = vld [vmem:[%s1274 + $0x4] sm:$0xf]
                %1279 = vst [vmem:[%s1275 + $0x4] sm:$0xf] %v1278
                %v1280 = vld [vmem:[%s1274 + $0x8] sm:$0xf]
                %1281 = vst [vmem:[%s1275 + $0x8] sm:$0xf] %v1280
                %s1282 = sadd.s32 1, %s1273
                %p1283 = scmp.ge.s32.totalorder %s1282, %s1265
                %s1284 = scalar_select %p1283, 0, %s1282
                %s1285 = smul.u32 %s1284, 12
                %s1286 = smul.u32 %s1284, 12
                %s1287 = scalar_lea.vmem %s1236, %s1285 [#allocation2]
                %s1288 = scalar_lea.vmem %s1256, %s1286
              $region53: #{vector_quantizer_forward.1} parent=47 // loop_footer
                %s1270 = sadd.s32 %s1268, 1
              $region54: #{vector_quantizer_forward.1} parent=47 // loop_footer_branch
                %1267 = sbr.rel target = $region50
              $region55: #{vector_quantizer_forward.1} parent=47 // loop_exit
                _
              %s1289 = sdiv.u32.pop %s1252, 3
              %s1290 = srem.u32.pop %s1252, 3
              %s1291 = smul.u32 %s1289, 3
              %s1292 = smul.u32 4, %s1291
              %s1293 = scalar_lea.vmem %s1236, %s1292 [#allocation2]
              %s1294 = smul.u32 4, %s1291
              %s1295 = scalar_lea.vmem %s1256, %s1294
              // While loop
              $region56: #{vector_quantizer_forward.1} parent=47 // loop_pre_header
                _
              $region57: #{vector_quantizer_forward.1} parent=47 // loop_header
                %s1297 = sphi 0, %s1299
                %p1298 = scmp.ge.s32.totalorder %s1297, %s1290
                %s1302 = sphi 0, %s1309
                %s1303 = sphi %s1293, %s1312
                %s1304 = sphi %s1295, %s1313
              $region58: #{vector_quantizer_forward.1} parent=47 // loop_header_branch
                %1301 = sbr.rel (%p1298) target = $region62
              $region59: #{vector_quantizer_forward.1} parent=47 // loop_body
                %v1305 = vld [vmem:[%s1303] sm:$0xf]
                %1306 = vst [vmem:[%s1304] sm:$0xf] %v1305
                %s1307 = sadd.s32 1, %s1302
                %p1308 = scmp.ge.s32.totalorder %s1307, %s1290
                %s1309 = scalar_select %p1308, 0, %s1307
                %s1310 = smul.u32 %s1309, 4
                %s1311 = smul.u32 %s1309, 4
                %s1312 = scalar_lea.vmem %s1293, %s1310 [#allocation2]
                %s1313 = scalar_lea.vmem %s1295, %s1311
              $region60: #{vector_quantizer_forward.1} parent=47 // loop_footer
                %s1299 = sadd.s32 %s1297, 1
              $region61: #{vector_quantizer_forward.1} parent=47 // loop_footer_branch
                %1296 = sbr.rel target = $region57
              $region62: #{vector_quantizer_forward.1} parent=47 // loop_exit
                _
            $region48: #{vector_quantizer_forward.1} parent=39 // pred_fallthru
              _
          $region40: #{vector_quantizer_forward.1} parent=35 // pred_fallthru
            _
          %1366 = vnop
        $region36: #{vector_quantizer_forward.1} parent=31 // pred_fallthru
          _
        // Predicated region
        $region81: #{vector_quantizer_forward.1} parent=31 // pred_check
          %p1367 = pneg %p130
        $region82: #{vector_quantizer_forward.1} parent=31 // pred_check_branch
          %1369 = sbr.rel (%p1367) target = $region84
        $region83: #{vector_quantizer_forward.1} parent=31 // pred_region
          _
        $region84: #{vector_quantizer_forward.1} parent=31 // pred_fallthru
          _
        // Predicated region
        $region85: #{vector_quantizer_forward.1} parent=31 // pred_check
          %p1370 = pneg %p156
        $region86: #{vector_quantizer_forward.1} parent=31 // pred_check_branch
          %1372 = sbr.rel (%p1370) target = $region88
        $region87: #{vector_quantizer_forward.1} parent=31 // pred_region
          _
        $region88: #{vector_quantizer_forward.1} parent=31 // pred_fallthru
          _
        // Predicated region
        $region89: #{vector_quantizer_forward.1} parent=31 // pred_check
          %p1373 = pneg %p182
        $region90: #{vector_quantizer_forward.1} parent=31 // pred_check_branch
          %1375 = sbr.rel (%p1373) target = $region92
        $region91: #{vector_quantizer_forward.1} parent=31 // pred_region
          _
        $region92: #{vector_quantizer_forward.1} parent=31 // pred_fallthru
          _
      $region32: #{vector_quantizer_forward.1} parent=5 // pred_fallthru
        _
      %p1376 = scmp.le.s32.totalorder 2, %s13
      // Predicated region
      $region93: #{vector_quantizer_forward.1} parent=5 // pred_check
        %p1377 = pneg %p1376
      $region94: #{vector_quantizer_forward.1} parent=5 // pred_check_branch
        %1379 = sbr.rel (%p1377) target = $region96
      $region95: #{vector_quantizer_forward.1} parent=5 // pred_region
        %s1380 = ssub.s32 %s13, 2
        // Predicated region
        $region97: #{vector_quantizer_forward.1} parent=95 // pred_check
          %p1381 = pneg %p110
        $region98: #{vector_quantizer_forward.1} parent=95 // pred_check_branch
          %1383 = sbr.rel (%p1381) target = $region100
        $region99: #{vector_quantizer_forward.1} parent=95 // pred_region
          %s1384 = sand.u32 %s95, 1
          %s1385 = sand.u32 %s95, 1
          %s1386 = smul.addr %s1385, 12
          %s1387 = scalar_lea.vmem [#allocation2], %s1386
        $region100: #{vector_quantizer_forward.1} parent=95 // pred_fallthru
          _
        // Predicated region
        $region101: #{vector_quantizer_forward.1} parent=95 // pred_check
          %p1388 = pneg %p136
        $region102: #{vector_quantizer_forward.1} parent=95 // pred_check_branch
          %1390 = sbr.rel (%p1388) target = $region104
        $region103: #{vector_quantizer_forward.1} parent=95 // pred_region
          %p1391 = scmp.lt.s32.totalorder %s19, 1
          %s1392 = scalar_select %p1391, %s19, 1
          %s1393 = scalar_lea.vmem %s4, %s1392
        $region104: #{vector_quantizer_forward.1} parent=95 // pred_fallthru
          _
        // Predicated region
        $region105: #{vector_quantizer_forward.1} parent=95 // pred_check
          %p1394 = pneg %p162
        $region106: #{vector_quantizer_forward.1} parent=95 // pred_check_branch
          %1396 = sbr.rel (%p1394) target = $region108
        $region107: #{vector_quantizer_forward.1} parent=95 // pred_region
          %p1397 = scmp.lt.s32.totalorder %s19, 1
          %s1398 = scalar_select %p1397, %s19, 1
          %s1399 = scalar_lea.vmem %s5, %s1398
        $region108: #{vector_quantizer_forward.1} parent=95 // pred_fallthru
          _
        // Predicated region
        $region109: #{vector_quantizer_forward.1} parent=95 // pred_check
          %p1400 = pneg %p188
        $region110: #{vector_quantizer_forward.1} parent=95 // pred_check_branch
          %1402 = sbr.rel (%p1400) target = $region112
        $region111: #{vector_quantizer_forward.1} parent=95 // pred_region
          %p1403 = scmp.lt.s32.totalorder %s19, 1
          %s1404 = scalar_select %p1403, %s19, 1
          %s1405 = scalar_lea.vmem %s6, %s1404
        $region112: #{vector_quantizer_forward.1} parent=95 // pred_fallthru
          _
      $region96: #{vector_quantizer_forward.1} parent=5 // pred_fallthru
        _
    $region6: #{vector_quantizer_forward.1} parent=1 // loop_footer
      %s17 = sadd.s32 1, %s13
    $region7: #{vector_quantizer_forward.1} parent=1 // loop_footer_branch
      %12 = sbr.rel target = $region3
    $region8: #{vector_quantizer_forward.1} parent=1 // loop_exit
      _

</llo_original>
